<compile_context>
chip_gen: v7x
topology: tpu7x:2x2x1
jax: 0.10.0
libtpu: 0.0.40
codegen_flags: <defaults>
</compile_context>

<pallas_src>
import jax
import jax.numpy as jnp
from jax.experimental import pallas as pl
from jax.experimental.pallas import tpu as pltpu

# ----- small, lane-aligned bert-like config (synthetic deterministic weights,
#       NOT a checkpoint load; real bert-base is HIDDEN=768, INTERMEDIATE=3072) -----
VOCAB        = 128
HIDDEN       = 128                     # multiple of 128 -> lane-dense tiles
N_HEADS      = 2
HEAD_DIM     = HIDDEN // N_HEADS       # 64
INTERMEDIATE = 512                     # multiple of 128
N_LAYERS     = 2
MAX_POS      = 128
TYPE_VOCAB   = 2
LN_EPS       = 1e-12

_PAR = pltpu.CompilerParams(dimension_semantics=("parallel",))


def _row_tile(m, cap=256):
    """Largest multiple-of-8 row tile <= cap that divides m; prefer >=2 tiles so
    the grid double-buffers DMA and can be split across TensorCores (v7x)."""
    if m % 8 != 0:
        return m                       # ragged: single whole-array block
    t = min(cap, m)
    while m % t != 0:
        t -= 8
    if t == m and m >= 16 and (m // 2) % 8 == 0:
        t = m // 2
    return t


def _row(tm, n):
    return pl.BlockSpec((tm, n), lambda i: (i, 0))


def _rep(shape):
    return pl.BlockSpec(shape, lambda i: (0,) * len(shape))


def _layernorm(h, g, b):
    mean = jnp.mean(h, axis=-1, keepdims=True)
    var = jnp.mean(jnp.square(h - mean), axis=-1, keepdims=True)
    return (h - mean) * jax.lax.rsqrt(var + LN_EPS) * g + b


# ---------------------------- Pallas kernels ----------------------------
def _ln_kernel(x_ref, g_ref, b_ref, o_ref):
    o_ref[...] = _layernorm(x_ref[...], g_ref[...], b_ref[...])


def _qkv_kernel(x_ref, w_ref, b_ref, o_ref):
    # Fused Q|K|V projection: [tm,H] @ [H,3H], bf16 MXU inputs, f32 accumulate.
    y = jnp.dot(x_ref[...].astype(jnp.bfloat16), w_ref[...],
                preferred_element_type=jnp.float32)
    o_ref[...] = y + b_ref[...]


def _attention_kernel(q_ref, k_ref, v_ref, m_ref, o_ref):
    # One (batch, head) per grid step; softmax path stays f32.
    q = q_ref[0].astype(jnp.bfloat16)          # [L, hd]
    k = k_ref[0].astype(jnp.bfloat16)
    v = v_ref[0].astype(jnp.bfloat16)
    s = jax.lax.dot_general(q, k, (((1,), (1,)), ((), ())),
                            preferred_element_type=jnp.float32)     # q @ k.T
    s = s * (1.0 / float(HEAD_DIM) ** 0.5) + m_ref[0]   # mask broadcasts over queries
    s = s - jnp.max(s, axis=-1, keepdims=True)
    p = jnp.exp(s)
    p = p * pl.reciprocal(jnp.sum(p, axis=-1, keepdims=True), approx=True)
    o_ref[0] = jnp.dot(p.astype(jnp.bfloat16), v, preferred_element_type=jnp.float32)


def _attn_out_ln_kernel(ctx_ref, res_ref, w_ref, b_ref, g_ref, bb_ref, o_ref):
    # O-projection + residual add + LayerNorm, fused.
    y = jnp.dot(ctx_ref[...].astype(jnp.bfloat16), w_ref[...],
                preferred_element_type=jnp.float32) + b_ref[...]
    o_ref[...] = _layernorm(y + res_ref[...], g_ref[...], bb_ref[...])


def _ffn_ln_kernel(h_ref, wi_ref, bi_ref, wo_ref, bo_ref, g_ref, b_ref, o_ref):
    # FFN1 + gelu + FFN2 + residual + LayerNorm fused; intermediate never hits HBM.
    x = h_ref[...]
    inter = jnp.dot(x.astype(jnp.bfloat16), wi_ref[...],
                    preferred_element_type=jnp.float32) + bi_ref[...]
    # TODO(synk): HF BERT uses erf-gelu; tanh approximation used for clean EUP lowering.
    inter = jax.nn.gelu(inter, approximate=True)
    y = jnp.dot(inter.astype(jnp.bfloat16), wo_ref[...],
                preferred_element_type=jnp.float32) + bo_ref[...]
    o_ref[...] = _layernorm(y + x, g_ref[...], b_ref[...])


# ---------------------------- pallas_call wrappers ----------------------------
def embed_layernorm(x, gamma, beta):
    M, H = x.shape
    tm = _row_tile(M)
    return pl.pallas_call(
        _ln_kernel,
        out_shape=jax.ShapeDtypeStruct((M, H), jnp.float32),
        grid=(M // tm,),
        in_specs=[_row(tm, H), _rep((1, H)), _rep((1, H))],
        out_specs=_row(tm, H),
        compiler_params=_PAR,
    )(x, gamma, beta)


def qkv_proj(x, w_qkv, b_qkv):
    M, H = x.shape
    N = w_qkv.shape[1]
    tm = _row_tile(M)
    return pl.pallas_call(
        _qkv_kernel,
        out_shape=jax.ShapeDtypeStruct((M, N), jnp.float32),
        grid=(M // tm,),
        in_specs=[_row(tm, H), _rep((H, N)), _rep((1, N))],
        out_specs=_row(tm, N),
        compiler_params=_PAR,
    )(x, w_qkv, b_qkv)


def attention(q, k, v, add_mask):
    BH, L, hd = q.shape
    qspec = pl.BlockSpec((1, L, hd), lambda i: (i, 0, 0))
    return pl.pallas_call(
        _attention_kernel,
        out_shape=jax.ShapeDtypeStruct((BH, L, hd), jnp.float32),
        grid=(BH,),
        in_specs=[qspec, qspec, qspec,
                  pl.BlockSpec((1, 1, L), lambda i: (i, 0, 0))],
        out_specs=qspec,
        compiler_params=_PAR,
    )(q, k, v, add_mask)


def attn_out_layernorm(ctx, residual, w, b, gamma, beta):
    M, H = ctx.shape
    tm = _row_tile(M)
    return pl.pallas_call(
        _attn_out_ln_kernel,
        out_shape=jax.ShapeDtypeStruct((M, H), jnp.float32),
        grid=(M // tm,),
        in_specs=[_row(tm, H), _row(tm, H), _rep((H, H)),
                  _rep((1, H)), _rep((1, H)), _rep((1, H))],
        out_specs=_row(tm, H),
        input_output_aliases={1: 0},   # residual stream re-uses the same HBM buffer
        compiler_params=_PAR,
    )(ctx, residual, w, b, gamma, beta)


def ffn_layernorm(h, wi, bi, wo2, bo2, gamma, beta):
    M, H = h.shape
    I = wi.shape[1]
    tm = _row_tile(M)
    return pl.pallas_call(
        _ffn_ln_kernel,
        out_shape=jax.ShapeDtypeStruct((M, H), jnp.float32),
        grid=(M // tm,),
        in_specs=[_row(tm, H), _rep((H, I)), _rep((1, I)),
                  _rep((I, H)), _rep((1, H)), _rep((1, H)), _rep((1, H))],
        out_specs=_row(tm, H),
        input_output_aliases={0: 0},   # h tile is fully re-written in place
        compiler_params=_PAR,
    )(h, wi, bi, wo2, bo2, gamma, beta)


# ---------------------------- parameters ----------------------------
def make_params(key):
    keys = iter(jax.random.split(key, 4 + 8 * N_LAYERS))

    def init(shape, dtype=jnp.bfloat16):
        return (0.02 * jax.random.normal(next(keys), shape, jnp.float32)).astype(dtype)

    params = {
        "word_emb": init((VOCAB, HIDDEN), jnp.float32),
        "pos_emb":  init((MAX_POS, HIDDEN), jnp.float32),
        "type_emb": init((TYPE_VOCAB, HIDDEN), jnp.float32),
        "emb_ln_g": jnp.ones((1, HIDDEN), jnp.float32),
        "emb_ln_b": jnp.zeros((1, HIDDEN), jnp.float32),
        "layers": [],
    }
    for _ in range(N_LAYERS):
        params["layers"].append({
            "w_qkv": init((HIDDEN, 3 * HIDDEN)),                   # fused Q|K|V (bf16)
            "b_qkv": jnp.zeros((1, 3 * HIDDEN), jnp.float32),
            "wo":    init((HIDDEN, HIDDEN)),
            "bo":    jnp.zeros((1, HIDDEN), jnp.float32),
            "ln1_g": jnp.ones((1, HIDDEN), jnp.float32),
            "ln1_b": jnp.zeros((1, HIDDEN), jnp.float32),
            "wi":    init((HIDDEN, INTERMEDIATE)),
            "bi":    jnp.zeros((1, INTERMEDIATE), jnp.float32),
            "wo2":   init((INTERMEDIATE, HIDDEN)),
            "bo2":   jnp.zeros((1, HIDDEN), jnp.float32),
            "ln2_g": jnp.ones((1, HIDDEN), jnp.float32),
            "ln2_b": jnp.zeros((1, HIDDEN), jnp.float32),
        })
    return params


# ---------------------------- BERT forward ----------------------------
@jax.jit
def bert_encoder(params, ids, mask):
    """Equivalent of BertModel(input_ids, attention_mask).last_hidden_state."""
    B, L = ids.shape

    # --- embeddings (gather/add is XLA glue; LayerNorm is a Pallas kernel) ---
    h = (jnp.take(params["word_emb"], ids, axis=0)
         + params["pos_emb"][:L][None, :, :]
         + params["type_emb"][0][None, None, :])
    h = h.reshape(B * L, HIDDEN)
    h = embed_layernorm(h, params["emb_ln_g"], params["emb_ln_b"])

    # additive attention mask built once, per-(batch,head) layout: [B*H, 1, L]
    add_mask = (1.0 - mask.astype(jnp.float32)) * -1e9
    add_mask = jnp.broadcast_to(add_mask[:, None, None, :],
                                (B, N_HEADS, 1, L)).reshape(B * N_HEADS, 1, L)

    def split_heads(t):   # [B*L, HIDDEN] -> [B*H, L, hd]
        return (t.reshape(B, L, N_HEADS, HEAD_DIM)
                 .transpose(0, 2, 1, 3)
                 .reshape(B * N_HEADS, L, HEAD_DIM))

    def merge_heads(t):   # [B*H, L, hd] -> [B*L, HIDDEN]
        return (t.reshape(B, N_HEADS, L, HEAD_DIM)
                 .transpose(0, 2, 1, 3)
                 .reshape(B * L, HIDDEN))

    for lyr in params["layers"]:
        # --- self attention: fused QKV proj -> attention -> fused O-proj+add+LN ---
        qkv = qkv_proj(h, lyr["w_qkv"], lyr["b_qkv"])
        q, k, v = jnp.split(qkv, 3, axis=-1)
        ctx = attention(split_heads(q), split_heads(k), split_heads(v), add_mask)
        h = attn_out_layernorm(merge_heads(ctx), h, lyr["wo"], lyr["bo"],
                               lyr["ln1_g"], lyr["ln1_b"])
        # --- fused feed forward + add + LN ---
        h = ffn_layernorm(h, lyr["wi"], lyr["bi"], lyr["wo2"], lyr["bo2"],
                          lyr["ln2_g"], lyr["ln2_b"])

    return h.reshape(B, L, HIDDEN)


def bert_module_forward(params, x, mask, batch_size=128):
    """Mirrors Bert.forward: chunk the leading dim by batch_size, run the model
    per chunk (jitted), assemble the [N, L, hidden] embedding tensor."""
    outs = []
    for start in range(0, x.shape[0], batch_size):
        end = min(x.shape[0], start + batch_size)
        outs.append(bert_encoder(params, x[start:end], mask[start:end]))
    return outs[0] if len(outs) == 1 else jnp.concatenate(outs, axis=0)


# ---------------------------- main ----------------------------
if __name__ == "__main__":
    key = jax.random.PRNGKey(0)
    pkey, ikey = jax.random.split(key)

    params = make_params(pkey)

    B, L = 2, 8
    x = jax.random.randint(ikey, (B, L), 0, VOCAB, dtype=jnp.int32)
    # deterministic "tokenizer mask": first sequence full, second padded after 5 tokens
    lengths = jnp.array([8, 5], dtype=jnp.int32)
    mask = (jnp.arange(L)[None, :] < lengths[:, None]).astype(jnp.int32)

    out = bert_module_forward(params, x, mask, batch_size=128)
    out = jax.block_until_ready(out)

    assert out.shape == (B, L, HIDDEN)
    assert out.dtype == jnp.float32
    assert bool(jnp.all(jnp.isfinite(out)))
    print("KERNEL_OK")
</pallas_src>

<mosaic_0001>
module attributes {stable_mosaic.version = 11 : i64} {
  func.func @_qkv_kernel(%arg0: i32, %arg1: memref<8x128xf32, #tpu.memory_space<vmem>>, %arg2: memref<128x384xbf16, #tpu.memory_space<vmem>>, %arg3: memref<1x384xf32, #tpu.memory_space<vmem>>, %arg4: memref<8x384xf32, #tpu.memory_space<vmem>>) attributes {dimension_semantics = [#tpu.dimension_semantics<parallel>], iteration_bounds = array<i64: 2>, scalar_prefetch = 0 : i64, scratch_operands = 0 : i64, tpu.core_type = #tpu.core_type<tc>, window_params = [{transform_indices = @transform_0, window_bounds = array<i64: 8, 128>}, {pipeline_mode = #tpu.pipeline_mode<synchronous>, transform_indices = @transform_1, window_bounds = array<i64: 128, 384>}, {pipeline_mode = #tpu.pipeline_mode<synchronous>, transform_indices = @transform_2, window_bounds = array<i64: 1, 384>}, {transform_indices = @transform_3, window_bounds = array<i64: 8, 384>}]} {
    %c0 = arith.constant 0 : index
    %c0_0 = arith.constant 0 : index
    %0 = vector.load %arg1[%c0, %c0_0] : memref<8x128xf32, #tpu.memory_space<vmem>>, vector<8x128xf32>
    %1 = arith.truncf %0 : vector<8x128xf32> to vector<8x128xbf16>
    %c0_1 = arith.constant 0 : index
    %c0_2 = arith.constant 0 : index
    %2 = vector.load %arg2[%c0_1, %c0_2] : memref<128x384xbf16, #tpu.memory_space<vmem>>, vector<128x384xbf16>
    %cst = arith.constant dense<0.000000e+00> : vector<8x384xf32>
    %3 = tpu.matmul %1, %2, %cst {dimension_numbers = #tpu.dot_dimension_numbers<[1], [0], [0], [1], [0, 0, 1, 1], [], []>} : vector<8x128xbf16>, vector<128x384xbf16>, vector<8x384xf32> -> vector<8x384xf32>
    %c0_3 = arith.constant 0 : index
    %c0_4 = arith.constant 0 : index
    %4 = vector.load %arg3[%c0_3, %c0_4] : memref<1x384xf32, #tpu.memory_space<vmem>>, vector<1x384xf32>
    %5 = vector.broadcast %4 : vector<1x384xf32> to vector<8x384xf32>
    %6 = arith.addf %3, %5 : vector<8x384xf32>
    %c0_5 = arith.constant 0 : index
    %c0_6 = arith.constant 0 : index
    %7 = vector.load %arg4[%c0_5, %c0_6] : memref<8x384xf32, #tpu.memory_space<vmem>>, vector<8x384xf32>
    tpu.vector_store %arg4[%c0_5, %c0_6], %6 {strides = array<i32>} : memref<8x384xf32, #tpu.memory_space<vmem>>, vector<8x384xf32>,
    return
  }
  func.func @transform_0(%arg0: i32) -> (i32, i32) {
    %c0_i32 = arith.constant 0 : i32
    %c0_i32_0 = arith.constant 0 : i32
    return %arg0, %c0_i32 : i32, i32
  }
  func.func @transform_1(%arg0: i32) -> (i32, i32) {
    %c0_i32 = arith.constant 0 : i32
    %c0_i32_0 = arith.constant 0 : i32
    %c0_i32_1 = arith.constant 0 : i32
    return %c0_i32, %c0_i32_0 : i32, i32
  }
  func.func @transform_2(%arg0: i32) -> (i32, i32) {
    %c0_i32 = arith.constant 0 : i32
    %c0_i32_0 = arith.constant 0 : i32
    %c0_i32_1 = arith.constant 0 : i32
    return %c0_i32, %c0_i32_0 : i32, i32
  }
  func.func @transform_3(%arg0: i32) -> (i32, i32) {
    %c0_i32 = arith.constant 0 : i32
    %c0_i32_0 = arith.constant 0 : i32
    return %arg0, %c0_i32 : i32, i32
  }
}

module attributes {stable_mosaic.version = 11 : i64} {
  func.func @_ln_kernel(%arg0: i32, %arg1: memref<8x128xf32, #tpu.memory_space<vmem>>, %arg2: memref<1x128xf32, #tpu.memory_space<vmem>>, %arg3: memref<1x128xf32, #tpu.memory_space<vmem>>, %arg4: memref<8x128xf32, #tpu.memory_space<vmem>>) attributes {dimension_semantics = [#tpu.dimension_semantics<parallel>], iteration_bounds = array<i64: 2>, scalar_prefetch = 0 : i64, scratch_operands = 0 : i64, tpu.core_type = #tpu.core_type<tc>, window_params = [{transform_indices = @transform_0, window_bounds = array<i64: 8, 128>}, {pipeline_mode = #tpu.pipeline_mode<synchronous>, transform_indices = @transform_1, window_bounds = array<i64: 1, 128>}, {pipeline_mode = #tpu.pipeline_mode<synchronous>, transform_indices = @transform_2, window_bounds = array<i64: 1, 128>}, {transform_indices = @transform_3, window_bounds = array<i64: 8, 128>}]} {
    %c0 = arith.constant 0 : index
    %c0_0 = arith.constant 0 : index
    %0 = vector.load %arg1[%c0, %c0_0] : memref<8x128xf32, #tpu.memory_space<vmem>>, vector<8x128xf32>
    %c0_1 = arith.constant 0 : index
    %c0_2 = arith.constant 0 : index
    %1 = vector.load %arg2[%c0_1, %c0_2] : memref<1x128xf32, #tpu.memory_space<vmem>>, vector<1x128xf32>
    %c0_3 = arith.constant 0 : index
    %c0_4 = arith.constant 0 : index
    %2 = vector.load %arg3[%c0_3, %c0_4] : memref<1x128xf32, #tpu.memory_space<vmem>>, vector<1x128xf32>
    %cst = arith.constant dense<0.000000e+00> : vector<8xf32>
    %3 = vector.multi_reduction <add>, %0, %cst [1] : vector<8x128xf32> to vector<8xf32>
    %4 = vector.shape_cast %3 : vector<8xf32> to vector<8x1xf32>
    %cst_5 = arith.constant 1.280000e+02 : f32
    %5 = vector.broadcast %cst_5 : f32 to vector<8x1xf32>
    %6 = arith.divf %4, %5 : vector<8x1xf32>
    %7 = vector.broadcast %6 : vector<8x1xf32> to vector<8x128xf32>
    %8 = arith.subf %0, %7 : vector<8x128xf32>
    %9 = arith.mulf %8, %8 : vector<8x128xf32>
    %cst_6 = arith.constant dense<0.000000e+00> : vector<8xf32>
    %10 = vector.multi_reduction <add>, %9, %cst_6 [1] : vector<8x128xf32> to vector<8xf32>
    %11 = vector.shape_cast %10 : vector<8xf32> to vector<8x1xf32>
    %cst_7 = arith.constant 1.280000e+02 : f32
    %12 = vector.broadcast %cst_7 : f32 to vector<8x1xf32>
    %13 = arith.divf %11, %12 : vector<8x1xf32>
    %14 = vector.broadcast %6 : vector<8x1xf32> to vector<8x128xf32>
    %15 = arith.subf %0, %14 : vector<8x128xf32>
    %cst_8 = arith.constant 9.99999996E-13 : f32
    %16 = vector.broadcast %cst_8 : f32 to vector<8x1xf32>
    %17 = arith.addf %13, %16 : vector<8x1xf32>
    %18 = math.rsqrt %17 : vector<8x1xf32>
    %19 = vector.broadcast %18 : vector<8x1xf32> to vector<8x128xf32>
    %20 = arith.mulf %15, %19 : vector<8x128xf32>
    %21 = vector.broadcast %1 : vector<1x128xf32> to vector<8x128xf32>
    %22 = arith.mulf %20, %21 : vector<8x128xf32>
    %23 = vector.broadcast %2 : vector<1x128xf32> to vector<8x128xf32>
    %24 = arith.addf %22, %23 : vector<8x128xf32>
    %c0_9 = arith.constant 0 : index
    %c0_10 = arith.constant 0 : index
    %25 = vector.load %arg4[%c0_9, %c0_10] : memref<8x128xf32, #tpu.memory_space<vmem>>, vector<8x128xf32>
    tpu.vector_store %arg4[%c0_9, %c0_10], %24 {strides = array<i32>} : memref<8x128xf32, #tpu.memory_space<vmem>>, vector<8x128xf32>,
    return
  }
  func.func @transform_0(%arg0: i32) -> (i32, i32) {
    %c0_i32 = arith.constant 0 : i32
    %c0_i32_0 = arith.constant 0 : i32
    return %arg0, %c0_i32 : i32, i32
  }
  func.func @transform_1(%arg0: i32) -> (i32, i32) {
    %c0_i32 = arith.constant 0 : i32
    %c0_i32_0 = arith.constant 0 : i32
    %c0_i32_1 = arith.constant 0 : i32
    return %c0_i32, %c0_i32_0 : i32, i32
  }
  func.func @transform_2(%arg0: i32) -> (i32, i32) {
    %c0_i32 = arith.constant 0 : i32
    %c0_i32_0 = arith.constant 0 : i32
    %c0_i32_1 = arith.constant 0 : i32
    return %c0_i32, %c0_i32_0 : i32, i32
  }
  func.func @transform_3(%arg0: i32) -> (i32, i32) {
    %c0_i32 = arith.constant 0 : i32
    %c0_i32_0 = arith.constant 0 : i32
    return %arg0, %c0_i32 : i32, i32
  }
}

module attributes {stable_mosaic.version = 11 : i64} {
  func.func @_attention_kernel(%arg0: i32, %arg1: memref<1x8x64xf32, #tpu.memory_space<vmem>>, %arg2: memref<1x8x64xf32, #tpu.memory_space<vmem>>, %arg3: memref<1x8x64xf32, #tpu.memory_space<vmem>>, %arg4: memref<1x1x8xf32, #tpu.memory_space<vmem>>, %arg5: memref<1x8x64xf32, #tpu.memory_space<vmem>>) attributes {dimension_semantics = [#tpu.dimension_semantics<parallel>], iteration_bounds = array<i64: 4>, scalar_prefetch = 0 : i64, scratch_operands = 0 : i64, tpu.core_type = #tpu.core_type<tc>, window_params = [{transform_indices = @transform_0, window_bounds = array<i64: 1, 8, 64>}, {transform_indices = @transform_1, window_bounds = array<i64: 1, 8, 64>}, {transform_indices = @transform_2, window_bounds = array<i64: 1, 8, 64>}, {transform_indices = @transform_3, window_bounds = array<i64: 1, 1, 8>}, {transform_indices = @transform_4, window_bounds = array<i64: 1, 8, 64>}]} {
    %c0 = arith.constant 0 : index
    %c0_0 = arith.constant 0 : index
    %c0_1 = arith.constant 0 : index
    %0 = vector.load %arg1[%c0, %c0_0, %c0_1] : memref<1x8x64xf32, #tpu.memory_space<vmem>>, vector<1x8x64xf32>
    %1 = vector.shape_cast %0 : vector<1x8x64xf32> to vector<8x64xf32>
    %2 = arith.truncf %1 : vector<8x64xf32> to vector<8x64xbf16>
    %c0_2 = arith.constant 0 : index
    %c0_3 = arith.constant 0 : index
    %c0_4 = arith.constant 0 : index
    %3 = vector.load %arg2[%c0_2, %c0_3, %c0_4] : memref<1x8x64xf32, #tpu.memory_space<vmem>>, vector<1x8x64xf32>
    %4 = vector.shape_cast %3 : vector<1x8x64xf32> to vector<8x64xf32>
    %5 = arith.truncf %4 : vector<8x64xf32> to vector<8x64xbf16>
    %c0_5 = arith.constant 0 : index
    %c0_6 = arith.constant 0 : index
    %c0_7 = arith.constant 0 : index
    %6 = vector.load %arg3[%c0_5, %c0_6, %c0_7] : memref<1x8x64xf32, #tpu.memory_space<vmem>>, vector<1x8x64xf32>
    %7 = vector.shape_cast %6 : vector<1x8x64xf32> to vector<8x64xf32>
    %8 = arith.truncf %7 : vector<8x64xf32> to vector<8x64xbf16>
    %cst = arith.constant dense<0.000000e+00> : vector<8x8xf32>
    %9 = tpu.matmul %2, %5, %cst {dimension_numbers = #tpu.dot_dimension_numbers<[1], [1], [0], [0], [0, 0, 1, 0], [], []>} : vector<8x64xbf16>, vector<8x64xbf16>, vector<8x8xf32> -> vector<8x8xf32>
    %cst_8 = arith.constant 1.250000e-01 : f32
    %10 = vector.broadcast %cst_8 : f32 to vector<8x8xf32>
    %11 = arith.mulf %9, %10 : vector<8x8xf32>
    %c0_9 = arith.constant 0 : index
    %c0_10 = arith.constant 0 : index
    %c0_11 = arith.constant 0 : index
    %12 = vector.load %arg4[%c0_9, %c0_10, %c0_11] : memref<1x1x8xf32, #tpu.memory_space<vmem>>, vector<1x1x8xf32>
    %13 = vector.shape_cast %12 : vector<1x1x8xf32> to vector<1x8xf32>
    %14 = vector.broadcast %13 : vector<1x8xf32> to vector<8x8xf32>
    %15 = arith.addf %11, %14 : vector<8x8xf32>
    %cst_12 = arith.constant dense<0xFF800000> : vector<8xf32>
    %16 = vector.multi_reduction <maximumf>, %15, %cst_12 [1] : vector<8x8xf32> to vector<8xf32>
    %17 = vector.shape_cast %16 : vector<8xf32> to vector<8x1xf32>
    %18 = vector.broadcast %17 : vector<8x1xf32> to vector<8x8xf32>
    %19 = arith.subf %15, %18 : vector<8x8xf32>
    %20 = math.exp %19 : vector<8x8xf32>
    %cst_13 = arith.constant dense<0.000000e+00> : vector<8xf32>
    %21 = vector.multi_reduction <add>, %20, %cst_13 [1] : vector<8x8xf32> to vector<8xf32>
    %22 = vector.shape_cast %21 : vector<8xf32> to vector<8x1xf32>
    %23 = tpu.reciprocal %22 {approx = true} : vector<8x1xf32> -> vector<8x1xf32>
    %24 = vector.broadcast %23 : vector<8x1xf32> to vector<8x8xf32>
    %25 = arith.mulf %20, %24 : vector<8x8xf32>
    %26 = arith.truncf %25 : vector<8x8xf32> to vector<8x8xbf16>
    %cst_14 = arith.constant dense<0.000000e+00> : vector<8x64xf32>
    %27 = tpu.matmul %26, %8, %cst_14 {dimension_numbers = #tpu.dot_dimension_numbers<[1], [0], [0], [1], [0, 0, 1, 1], [], []>} : vector<8x8xbf16>, vector<8x64xbf16>, vector<8x64xf32> -> vector<8x64xf32>
    %c0_15 = arith.constant 0 : index
    %c0_16 = arith.constant 0 : index
    %c0_17 = arith.constant 0 : index
    %28 = vector.load %arg5[%c0_15, %c0_16, %c0_17] : memref<1x8x64xf32, #tpu.memory_space<vmem>>, vector<1x8x64xf32>
    %29 = vector.shape_cast %28 : vector<1x8x64xf32> to vector<8x64xf32>
    %30 = vector.shape_cast %27 : vector<8x64xf32> to vector<1x8x64xf32>
    tpu.vector_store %arg5[%c0_15, %c0_16, %c0_17], %30 {strides = array<i32>} : memref<1x8x64xf32, #tpu.memory_space<vmem>>, vector<1x8x64xf32>,
    return
  }
  func.func @transform_0(%arg0: i32) -> (i32, i32, i32) {
    %c0_i32 = arith.constant 0 : i32
    %c0_i32_0 = arith.constant 0 : i32
    %c0_i32_1 = arith.constant 0 : i32
    return %arg0, %c0_i32, %c0_i32_0 : i32, i32, i32
  }
  func.func @transform_1(%arg0: i32) -> (i32, i32, i32) {
    %c0_i32 = arith.constant 0 : i32
    %c0_i32_0 = arith.constant 0 : i32
    %c0_i32_1 = arith.constant 0 : i32
    return %arg0, %c0_i32, %c0_i32_0 : i32, i32, i32
  }
  func.func @transform_2(%arg0: i32) -> (i32, i32, i32) {
    %c0_i32 = arith.constant 0 : i32
    %c0_i32_0 = arith.constant 0 : i32
    %c0_i32_1 = arith.constant 0 : i32
    return %arg0, %c0_i32, %c0_i32_0 : i32, i32, i32
  }
  func.func @transform_3(%arg0: i32) -> (i32, i32, i32) {
    %c0_i32 = arith.constant 0 : i32
    %c0_i32_0 = arith.constant 0 : i32
    %c0_i32_1 = arith.constant 0 : i32
    return %arg0, %c0_i32, %c0_i32_0 : i32, i32, i32
  }
  func.func @transform_4(%arg0: i32) -> (i32, i32, i32) {
    %c0_i32 = arith.constant 0 : i32
    %c0_i32_0 = arith.constant 0 : i32
    %c0_i32_1 = arith.constant 0 : i32
    return %arg0, %c0_i32, %c0_i32_0 : i32, i32, i32
  }
}

module attributes {stable_mosaic.version = 11 : i64} {
  func.func @_attn_out_ln_kernel(%arg0: i32, %arg1: memref<8x128xf32, #tpu.memory_space<vmem>>, %arg2: memref<8x128xf32, #tpu.memory_space<vmem>>, %arg3: memref<128x128xbf16, #tpu.memory_space<vmem>>, %arg4: memref<1x128xf32, #tpu.memory_space<vmem>>, %arg5: memref<1x128xf32, #tpu.memory_space<vmem>>, %arg6: memref<1x128xf32, #tpu.memory_space<vmem>>, %arg7: memref<8x128xf32, #tpu.memory_space<vmem>>) attributes {dimension_semantics = [#tpu.dimension_semantics<parallel>], iteration_bounds = array<i64: 2>, scalar_prefetch = 0 : i64, scratch_operands = 0 : i64, tpu.core_type = #tpu.core_type<tc>, window_params = [{transform_indices = @transform_0, window_bounds = array<i64: 8, 128>}, {transform_indices = @transform_1, window_bounds = array<i64: 8, 128>}, {pipeline_mode = #tpu.pipeline_mode<synchronous>, transform_indices = @transform_2, window_bounds = array<i64: 128, 128>}, {pipeline_mode = #tpu.pipeline_mode<synchronous>, transform_indices = @transform_3, window_bounds = array<i64: 1, 128>}, {pipeline_mode = #tpu.pipeline_mode<synchronous>, transform_indices = @transform_4, window_bounds = array<i64: 1, 128>}, {pipeline_mode = #tpu.pipeline_mode<synchronous>, transform_indices = @transform_5, window_bounds = array<i64: 1, 128>}, {transform_indices = @transform_6, window_bounds = array<i64: 8, 128>}]} {
    %c0 = arith.constant 0 : index
    %c0_0 = arith.constant 0 : index
    %0 = vector.load %arg1[%c0, %c0_0] : memref<8x128xf32, #tpu.memory_space<vmem>>, vector<8x128xf32>
    %1 = arith.truncf %0 : vector<8x128xf32> to vector<8x128xbf16>
    %c0_1 = arith.constant 0 : index
    %c0_2 = arith.constant 0 : index
    %2 = vector.load %arg3[%c0_1, %c0_2] : memref<128x128xbf16, #tpu.memory_space<vmem>>, vector<128x128xbf16>
    %cst = arith.constant dense<0.000000e+00> : vector<8x128xf32>
    %3 = tpu.matmul %1, %2, %cst {dimension_numbers = #tpu.dot_dimension_numbers<[1], [0], [0], [1], [0, 0, 1, 1], [], []>} : vector<8x128xbf16>, vector<128x128xbf16>, vector<8x128xf32> -> vector<8x128xf32>
    %c0_3 = arith.constant 0 : index
    %c0_4 = arith.constant 0 : index
    %4 = vector.load %arg4[%c0_3, %c0_4] : memref<1x128xf32, #tpu.memory_space<vmem>>, vector<1x128xf32>
    %5 = vector.broadcast %4 : vector<1x128xf32> to vector<8x128xf32>
    %6 = arith.addf %3, %5 : vector<8x128xf32>
    %c0_5 = arith.constant 0 : index
    %c0_6 = arith.constant 0 : index
    %7 = vector.load %arg2[%c0_5, %c0_6] : memref<8x128xf32, #tpu.memory_space<vmem>>, vector<8x128xf32>
    %8 = arith.addf %6, %7 : vector<8x128xf32>
    %c0_7 = arith.constant 0 : index
    %c0_8 = arith.constant 0 : index
    %9 = vector.load %arg5[%c0_7, %c0_8] : memref<1x128xf32, #tpu.memory_space<vmem>>, vector<1x128xf32>
    %c0_9 = arith.constant 0 : index
    %c0_10 = arith.constant 0 : index
    %10 = vector.load %arg6[%c0_9, %c0_10] : memref<1x128xf32, #tpu.memory_space<vmem>>, vector<1x128xf32>
    %cst_11 = arith.constant dense<0.000000e+00> : vector<8xf32>
    %11 = vector.multi_reduction <add>, %8, %cst_11 [1] : vector<8x128xf32> to vector<8xf32>
    %12 = vector.shape_cast %11 : vector<8xf32> to vector<8x1xf32>
    %cst_12 = arith.constant 1.280000e+02 : f32
    %13 = vector.broadcast %cst_12 : f32 to vector<8x1xf32>
    %14 = arith.divf %12, %13 : vector<8x1xf32>
    %15 = vector.broadcast %14 : vector<8x1xf32> to vector<8x128xf32>
    %16 = arith.subf %8, %15 : vector<8x128xf32>
    %17 = arith.mulf %16, %16 : vector<8x128xf32>
    %cst_13 = arith.constant dense<0.000000e+00> : vector<8xf32>
    %18 = vector.multi_reduction <add>, %17, %cst_13 [1] : vector<8x128xf32> to vector<8xf32>
    %19 = vector.shape_cast %18 : vector<8xf32> to vector<8x1xf32>
    %cst_14 = arith.constant 1.280000e+02 : f32
    %20 = vector.broadcast %cst_14 : f32 to vector<8x1xf32>
    %21 = arith.divf %19, %20 : vector<8x1xf32>
    %22 = vector.broadcast %14 : vector<8x1xf32> to vector<8x128xf32>
    %23 = arith.subf %8, %22 : vector<8x128xf32>
    %cst_15 = arith.constant 9.99999996E-13 : f32
    %24 = vector.broadcast %cst_15 : f32 to vector<8x1xf32>
    %25 = arith.addf %21, %24 : vector<8x1xf32>
    %26 = math.rsqrt %25 : vector<8x1xf32>
    %27 = vector.broadcast %26 : vector<8x1xf32> to vector<8x128xf32>
    %28 = arith.mulf %23, %27 : vector<8x128xf32>
    %29 = vector.broadcast %9 : vector<1x128xf32> to vector<8x128xf32>
    %30 = arith.mulf %28, %29 : vector<8x128xf32>
    %31 = vector.broadcast %10 : vector<1x128xf32> to vector<8x128xf32>
    %32 = arith.addf %30, %31 : vector<8x128xf32>
    %c0_16 = arith.constant 0 : index
    %c0_17 = arith.constant 0 : index
    %33 = vector.load %arg7[%c0_16, %c0_17] : memref<8x128xf32, #tpu.memory_space<vmem>>, vector<8x128xf32>
    tpu.vector_store %arg7[%c0_16, %c0_17], %32 {strides = array<i32>} : memref<8x128xf32, #tpu.memory_space<vmem>>, vector<8x128xf32>,
    return
  }
  func.func @transform_0(%arg0: i32) -> (i32, i32) {
    %c0_i32 = arith.constant 0 : i32
    %c0_i32_0 = arith.constant 0 : i32
    return %arg0, %c0_i32 : i32, i32
  }
  func.func @transform_1(%arg0: i32) -> (i32, i32) {
    %c0_i32 = arith.constant 0 : i32
    %c0_i32_0 = arith.constant 0 : i32
    return %arg0, %c0_i32 : i32, i32
  }
  func.func @transform_2(%arg0: i32) -> (i32, i32) {
    %c0_i32 = arith.constant 0 : i32
    %c0_i32_0 = arith.constant 0 : i32
    %c0_i32_1 = arith.constant 0 : i32
    return %c0_i32, %c0_i32_0 : i32, i32
  }
  func.func @transform_3(%arg0: i32) -> (i32, i32) {
    %c0_i32 = arith.constant 0 : i32
    %c0_i32_0 = arith.constant 0 : i32
    %c0_i32_1 = arith.constant 0 : i32
    return %c0_i32, %c0_i32_0 : i32, i32
  }
  func.func @transform_4(%arg0: i32) -> (i32, i32) {
    %c0_i32 = arith.constant 0 : i32
    %c0_i32_0 = arith.constant 0 : i32
    %c0_i32_1 = arith.constant 0 : i32
    return %c0_i32, %c0_i32_0 : i32, i32
  }
  func.func @transform_5(%arg0: i32) -> (i32, i32) {
    %c0_i32 = arith.constant 0 : i32
    %c0_i32_0 = arith.constant 0 : i32
    %c0_i32_1 = arith.constant 0 : i32
    return %c0_i32, %c0_i32_0 : i32, i32
  }
  func.func @transform_6(%arg0: i32) -> (i32, i32) {
    %c0_i32 = arith.constant 0 : i32
    %c0_i32_0 = arith.constant 0 : i32
    return %arg0, %c0_i32 : i32, i32
  }
}

module attributes {stable_mosaic.version = 11 : i64} {
  func.func @_ffn_ln_kernel(%arg0: i32, %arg1: memref<8x128xf32, #tpu.memory_space<vmem>>, %arg2: memref<128x512xbf16, #tpu.memory_space<vmem>>, %arg3: memref<1x512xf32, #tpu.memory_space<vmem>>, %arg4: memref<512x128xbf16, #tpu.memory_space<vmem>>, %arg5: memref<1x128xf32, #tpu.memory_space<vmem>>, %arg6: memref<1x128xf32, #tpu.memory_space<vmem>>, %arg7: memref<1x128xf32, #tpu.memory_space<vmem>>, %arg8: memref<8x128xf32, #tpu.memory_space<vmem>>) attributes {dimension_semantics = [#tpu.dimension_semantics<parallel>], iteration_bounds = array<i64: 2>, scalar_prefetch = 0 : i64, scratch_operands = 0 : i64, tpu.core_type = #tpu.core_type<tc>, window_params = [{transform_indices = @transform_0, window_bounds = array<i64: 8, 128>}, {pipeline_mode = #tpu.pipeline_mode<synchronous>, transform_indices = @transform_1, window_bounds = array<i64: 128, 512>}, {pipeline_mode = #tpu.pipeline_mode<synchronous>, transform_indices = @transform_2, window_bounds = array<i64: 1, 512>}, {pipeline_mode = #tpu.pipeline_mode<synchronous>, transform_indices = @transform_3, window_bounds = array<i64: 512, 128>}, {pipeline_mode = #tpu.pipeline_mode<synchronous>, transform_indices = @transform_4, window_bounds = array<i64: 1, 128>}, {pipeline_mode = #tpu.pipeline_mode<synchronous>, transform_indices = @transform_5, window_bounds = array<i64: 1, 128>}, {pipeline_mode = #tpu.pipeline_mode<synchronous>, transform_indices = @transform_6, window_bounds = array<i64: 1, 128>}, {transform_indices = @transform_7, window_bounds = array<i64: 8, 128>}]} {
    %c0 = arith.constant 0 : index
    %c0_0 = arith.constant 0 : index
    %0 = vector.load %arg1[%c0, %c0_0] : memref<8x128xf32, #tpu.memory_space<vmem>>, vector<8x128xf32>
    %1 = arith.truncf %0 : vector<8x128xf32> to vector<8x128xbf16>
    %c0_1 = arith.constant 0 : index
    %c0_2 = arith.constant 0 : index
    %2 = vector.load %arg2[%c0_1, %c0_2] : memref<128x512xbf16, #tpu.memory_space<vmem>>, vector<128x512xbf16>
    %cst = arith.constant dense<0.000000e+00> : vector<8x512xf32>
    %3 = tpu.matmul %1, %2, %cst {dimension_numbers = #tpu.dot_dimension_numbers<[1], [0], [0], [1], [0, 0, 1, 1], [], []>} : vector<8x128xbf16>, vector<128x512xbf16>, vector<8x512xf32> -> vector<8x512xf32>
    %c0_3 = arith.constant 0 : index
    %c0_4 = arith.constant 0 : index
    %4 = vector.load %arg3[%c0_3, %c0_4] : memref<1x512xf32, #tpu.memory_space<vmem>>, vector<1x512xf32>
    %5 = vector.broadcast %4 : vector<1x512xf32> to vector<8x512xf32>
    %6 = arith.addf %3, %5 : vector<8x512xf32>
    %7 = arith.mulf %6, %6 : vector<8x512xf32>
    %8 = arith.mulf %6, %7 : vector<8x512xf32>
    %cst_5 = arith.constant 4.471500e-02 : f32
    %9 = vector.broadcast %cst_5 : f32 to vector<8x512xf32>
    %10 = arith.mulf %9, %8 : vector<8x512xf32>
    %11 = arith.addf %6, %10 : vector<8x512xf32>
    %cst_6 = arith.constant 0.797884583 : f32
    %12 = vector.broadcast %cst_6 : f32 to vector<8x512xf32>
    %13 = arith.mulf %12, %11 : vector<8x512xf32>
    %14 = math.tanh %13 : vector<8x512xf32>
    %cst_7 = arith.constant 1.000000e+00 : f32
    %15 = vector.broadcast %cst_7 : f32 to vector<8x512xf32>
    %16 = arith.addf %15, %14 : vector<8x512xf32>
    %cst_8 = arith.constant 5.000000e-01 : f32
    %17 = vector.broadcast %cst_8 : f32 to vector<8x512xf32>
    %18 = arith.mulf %17, %16 : vector<8x512xf32>
    %19 = arith.mulf %6, %18 : vector<8x512xf32>
    %20 = arith.truncf %19 : vector<8x512xf32> to vector<8x512xbf16>
    %c0_9 = arith.constant 0 : index
    %c0_10 = arith.constant 0 : index
    %21 = vector.load %arg4[%c0_9, %c0_10] : memref<512x128xbf16, #tpu.memory_space<vmem>>, vector<512x128xbf16>
    %cst_11 = arith.constant dense<0.000000e+00> : vector<8x128xf32>
    %22 = tpu.matmul %20, %21, %cst_11 {dimension_numbers = #tpu.dot_dimension_numbers<[1], [0], [0], [1], [0, 0, 1, 1], [], []>} : vector<8x512xbf16>, vector<512x128xbf16>, vector<8x128xf32> -> vector<8x128xf32>
    %c0_12 = arith.constant 0 : index
    %c0_13 = arith.constant 0 : index
    %23 = vector.load %arg5[%c0_12, %c0_13] : memref<1x128xf32, #tpu.memory_space<vmem>>, vector<1x128xf32>
    %24 = vector.broadcast %23 : vector<1x128xf32> to vector<8x128xf32>
    %25 = arith.addf %22, %24 : vector<8x128xf32>
    %26 = arith.addf %25, %0 : vector<8x128xf32>
    %c0_14 = arith.constant 0 : index
    %c0_15 = arith.constant 0 : index
    %27 = vector.load %arg6[%c0_14, %c0_15] : memref<1x128xf32, #tpu.memory_space<vmem>>, vector<1x128xf32>
    %c0_16 = arith.constant 0 : index
    %c0_17 = arith.constant 0 : index
    %28 = vector.load %arg7[%c0_16, %c0_17] : memref<1x128xf32, #tpu.memory_space<vmem>>, vector<1x128xf32>
    %cst_18 = arith.constant dense<0.000000e+00> : vector<8xf32>
    %29 = vector.multi_reduction <add>, %26, %cst_18 [1] : vector<8x128xf32> to vector<8xf32>
    %30 = vector.shape_cast %29 : vector<8xf32> to vector<8x1xf32>
    %cst_19 = arith.constant 1.280000e+02 : f32
    %31 = vector.broadcast %cst_19 : f32 to vector<8x1xf32>
    %32 = arith.divf %30, %31 : vector<8x1xf32>
    %33 = vector.broadcast %32 : vector<8x1xf32> to vector<8x128xf32>
    %34 = arith.subf %26, %33 : vector<8x128xf32>
    %35 = arith.mulf %34, %34 : vector<8x128xf32>
    %cst_20 = arith.constant dense<0.000000e+00> : vector<8xf32>
    %36 = vector.multi_reduction <add>, %35, %cst_20 [1] : vector<8x128xf32> to vector<8xf32>
    %37 = vector.shape_cast %36 : vector<8xf32> to vector<8x1xf32>
    %cst_21 = arith.constant 1.280000e+02 : f32
    %38 = vector.broadcast %cst_21 : f32 to vector<8x1xf32>
    %39 = arith.divf %37, %38 : vector<8x1xf32>
    %40 = vector.broadcast %32 : vector<8x1xf32> to vector<8x128xf32>
    %41 = arith.subf %26, %40 : vector<8x128xf32>
    %cst_22 = arith.constant 9.99999996E-13 : f32
    %42 = vector.broadcast %cst_22 : f32 to vector<8x1xf32>
    %43 = arith.addf %39, %42 : vector<8x1xf32>
    %44 = math.rsqrt %43 : vector<8x1xf32>
    %45 = vector.broadcast %44 : vector<8x1xf32> to vector<8x128xf32>
    %46 = arith.mulf %41, %45 : vector<8x128xf32>
    %47 = vector.broadcast %27 : vector<1x128xf32> to vector<8x128xf32>
    %48 = arith.mulf %46, %47 : vector<8x128xf32>
    %49 = vector.broadcast %28 : vector<1x128xf32> to vector<8x128xf32>
    %50 = arith.addf %48, %49 : vector<8x128xf32>
    %c0_23 = arith.constant 0 : index
    %c0_24 = arith.constant 0 : index
    %51 = vector.load %arg8[%c0_23, %c0_24] : memref<8x128xf32, #tpu.memory_space<vmem>>, vector<8x128xf32>
    tpu.vector_store %arg8[%c0_23, %c0_24], %50 {strides = array<i32>} : memref<8x128xf32, #tpu.memory_space<vmem>>, vector<8x128xf32>,
    return
  }
  func.func @transform_0(%arg0: i32) -> (i32, i32) {
    %c0_i32 = arith.constant 0 : i32
    %c0_i32_0 = arith.constant 0 : i32
    return %arg0, %c0_i32 : i32, i32
  }
  func.func @transform_1(%arg0: i32) -> (i32, i32) {
    %c0_i32 = arith.constant 0 : i32
    %c0_i32_0 = arith.constant 0 : i32
    %c0_i32_1 = arith.constant 0 : i32
    return %c0_i32, %c0_i32_0 : i32, i32
  }
  func.func @transform_2(%arg0: i32) -> (i32, i32) {
    %c0_i32 = arith.constant 0 : i32
    %c0_i32_0 = arith.constant 0 : i32
    %c0_i32_1 = arith.constant 0 : i32
    return %c0_i32, %c0_i32_0 : i32, i32
  }
  func.func @transform_3(%arg0: i32) -> (i32, i32) {
    %c0_i32 = arith.constant 0 : i32
    %c0_i32_0 = arith.constant 0 : i32
    %c0_i32_1 = arith.constant 0 : i32
    return %c0_i32, %c0_i32_0 : i32, i32
  }
  func.func @transform_4(%arg0: i32) -> (i32, i32) {
    %c0_i32 = arith.constant 0 : i32
    %c0_i32_0 = arith.constant 0 : i32
    %c0_i32_1 = arith.constant 0 : i32
    return %c0_i32, %c0_i32_0 : i32, i32
  }
  func.func @transform_5(%arg0: i32) -> (i32, i32) {
    %c0_i32 = arith.constant 0 : i32
    %c0_i32_0 = arith.constant 0 : i32
    %c0_i32_1 = arith.constant 0 : i32
    return %c0_i32, %c0_i32_0 : i32, i32
  }
  func.func @transform_6(%arg0: i32) -> (i32, i32) {
    %c0_i32 = arith.constant 0 : i32
    %c0_i32_0 = arith.constant 0 : i32
    %c0_i32_1 = arith.constant 0 : i32
    return %c0_i32, %c0_i32_0 : i32, i32
  }
  func.func @transform_7(%arg0: i32) -> (i32, i32) {
    %c0_i32 = arith.constant 0 : i32
    %c0_i32_0 = arith.constant 0 : i32
    return %arg0, %c0_i32 : i32, i32
  }
}

</mosaic_0001>

<llo_original>
// kernel: bert_encoder.9
$region0: #{bert_encoder.9}
  #allocation0 [shape = 'u32[]', space=smem, size = 0x4, offset = 0x4, fixed_abs, tag = 'smem constant byte address 0x4 - core index']
  #allocation1 [shape = 'u32[144,128]{1,0:T(1,128)}', space=vmem, size = 0x12000, scoped, tag = 'internal scratch']
  %s0 = inlined_call_operand.vmem [shape: f32[16,128], index: 0, kind: input, shape index: {}]
  %s1 = inlined_call_operand.vmem [shape: f32[1,128], index: 1, kind: input, shape index: {}]
  %s2 = inlined_call_operand.vmem [shape: f32[1,128], index: 2, kind: input, shape index: {}]
  %s3 = inlined_call_operand.vmem [shape: f32[16,128], index: 3, kind: output, shape index: {}]
  %s4 = sld [smem:[#allocation0]]
  $region45: #{bert_encoder.9} parent=0
    _
  %s6 = ssub.s32 1, %s4
  %s7 = scalar_select 0, %s6, %s4
  loop: start=0, step=1, limit=4
  $region2: #{bert_encoder.9} parent=0 // loop_pre_header
    _
  $region3: #{bert_encoder.9} parent=0 // loop_header
    %s9 = sphi 0, %s13
    %p10 = scmp.ge.s32.totalorder %s9, 4
    %s19 = sphi 0, %s21
    %s22 = sphi 0, %s19
    %s23 = sphi 0, %s22
    %s39 = sphi 0, %s23
    %s43 = sphi 0, %s43
    %s45 = sphi 0, %s43
    %s46 = sphi 0, %s45
    %s60 = sphi 0, %s46
    %s64 = sphi 0, %s64
    %s66 = sphi 0, %s64
    %s67 = sphi 0, %s66
    %s81 = sphi 0, %s67
    %s87 = sphi 0, %s89
    %s90 = sphi 0, %s87
    %s91 = sphi 0, %s90
    %s107 = sphi 0, %s91
  $region4: #{bert_encoder.9} parent=0 // loop_header_branch
    %12 = sbr.rel (%p10) target = $region8
  $region5: #{bert_encoder.9} parent=0 // loop_body
    %s14 = ssub.s32 %s9, 1
    %s15 = ssub.s32 %s9, 2
    %s16 = sadd.s32 %s9, 1
    %s17 = ssub.s32 %s9, %s16
    %p18 = scmp.eq.s32.totalorder %s17, 0
    %s20 = sadd.s32 %s19, 1
    %s21 = scalar_select %p18, %s19, %s20
    %p24 = pneg %p18
    %p25 = scmp.eq.s32.totalorder %s9, 1
    %p26 = por %p24, %p25
    %p27 = scmp.ne.s32.totalorder %s19, %s22
    %p28 = scmp.eq.s32.totalorder %s9, 0
    %p29 = por %p27, %p28
    %p30 = scmp.ne.s32.totalorder %s19, %s22
    %p31 = scmp.eq.s32.totalorder %s14, 1
    %p32 = por %p30, %p31
    %p33 = scmp.ne.s32.totalorder %s22, %s23
    %p34 = scmp.eq.s32.totalorder %s14, 0
    %p35 = por %p33, %p34
    %p36 = scmp.ne.s32.totalorder %s22, %s23
    %p37 = scmp.eq.s32.totalorder %s15, 1
    %p38 = por %p36, %p37
    %p40 = scmp.ne.s32.totalorder %s23, %s39
    %p41 = scmp.eq.s32.totalorder %s15, 0
    %p42 = por %p40, %p41
    %s44 = sadd.s32 %s43, 1
    %p47 = scmp.eq.s32.totalorder %s9, 1
    %p48 = scmp.ne.s32.totalorder %s43, %s45
    %p49 = scmp.eq.s32.totalorder %s9, 0
    %p50 = por %p48, %p49
    %p51 = scmp.ne.s32.totalorder %s43, %s45
    %p52 = scmp.eq.s32.totalorder %s14, 1
    %p53 = por %p51, %p52
    %p54 = scmp.ne.s32.totalorder %s45, %s46
    %p55 = scmp.eq.s32.totalorder %s14, 0
    %p56 = por %p54, %p55
    %p57 = scmp.ne.s32.totalorder %s45, %s46
    %p58 = scmp.eq.s32.totalorder %s15, 1
    %p59 = por %p57, %p58
    %p61 = scmp.ne.s32.totalorder %s46, %s60
    %p62 = scmp.eq.s32.totalorder %s15, 0
    %p63 = por %p61, %p62
    %s65 = sadd.s32 %s64, 1
    %p68 = scmp.eq.s32.totalorder %s9, 1
    %p69 = scmp.ne.s32.totalorder %s64, %s66
    %p70 = scmp.eq.s32.totalorder %s9, 0
    %p71 = por %p69, %p70
    %p72 = scmp.ne.s32.totalorder %s64, %s66
    %p73 = scmp.eq.s32.totalorder %s14, 1
    %p74 = por %p72, %p73
    %p75 = scmp.ne.s32.totalorder %s66, %s67
    %p76 = scmp.eq.s32.totalorder %s14, 0
    %p77 = por %p75, %p76
    %p78 = scmp.ne.s32.totalorder %s66, %s67
    %p79 = scmp.eq.s32.totalorder %s15, 1
    %p80 = por %p78, %p79
    %p82 = scmp.ne.s32.totalorder %s67, %s81
    %p83 = scmp.eq.s32.totalorder %s15, 0
    %p84 = por %p82, %p83
    %s85 = ssub.s32 %s9, %s16
    %p86 = scmp.eq.s32.totalorder %s85, 0
    %s88 = sadd.s32 %s87, 1
    %s89 = scalar_select %p86, %s87, %s88
    %p92 = pneg %p86
    %p93 = scmp.eq.s32.totalorder %s9, 1
    %p94 = por %p92, %p93
    %p95 = scmp.ne.s32.totalorder %s87, %s90
    %p96 = scmp.eq.s32.totalorder %s9, 0
    %p97 = por %p95, %p96
    %p98 = scmp.ne.s32.totalorder %s87, %s90
    %p99 = scmp.eq.s32.totalorder %s14, 1
    %p100 = por %p98, %p99
    %p101 = scmp.ne.s32.totalorder %s90, %s91
    %p102 = scmp.eq.s32.totalorder %s14, 0
    %p103 = por %p101, %p102
    %p104 = scmp.ne.s32.totalorder %s90, %s91
    %p105 = scmp.eq.s32.totalorder %s15, 1
    %p106 = por %p104, %p105
    %p108 = scmp.ne.s32.totalorder %s91, %s107
    %p109 = scmp.eq.s32.totalorder %s15, 0
    %p110 = por %p108, %p109
    %p111 = scmp.le.s32.totalorder 1, %s9
    %p112 = scmp.lt.s32.totalorder %s9, 3
    %p113 = pnand %p111, %p112
    %p114 = pneg %p113
    // Predicated region
    $region9: #{bert_encoder.9} parent=5 // pred_check
      _
    $region10: #{bert_encoder.9} parent=5 // pred_check_branch
      %116 = sbr.rel (%p113) target = $region12
    $region11: #{bert_encoder.9} parent=5 // pred_region
      %s117 = ssub.s32 %s9, 1
      // Predicated region
      $region13: #{bert_encoder.9} parent=11 // pred_check
        %p118 = pneg %p56
      $region14: #{bert_encoder.9} parent=11 // pred_check_branch
        %120 = sbr.rel (%p118) target = $region16
      $region15: #{bert_encoder.9} parent=11 // pred_region
        _
      $region16: #{bert_encoder.9} parent=11 // pred_fallthru
        _
      // Predicated region
      $region17: #{bert_encoder.9} parent=11 // pred_check
        %p121 = pneg %p77
      $region18: #{bert_encoder.9} parent=11 // pred_check_branch
        %123 = sbr.rel (%p121) target = $region20
      $region19: #{bert_encoder.9} parent=11 // pred_region
        _
      $region20: #{bert_encoder.9} parent=11 // pred_fallthru
        _
    $region12: #{bert_encoder.9} parent=5 // pred_fallthru
      _
    %p124 = scmp.lt.s32.totalorder %s9, 2
    // Predicated region
    $region21: #{bert_encoder.9} parent=5 // pred_check
      %p125 = pneg %p124
    $region22: #{bert_encoder.9} parent=5 // pred_check_branch
      %127 = sbr.rel (%p125) target = $region24
    $region23: #{bert_encoder.9} parent=5 // pred_region
      // Predicated region
      $region25: #{bert_encoder.9} parent=23 // pred_check
        %p128 = pneg %p29
      $region26: #{bert_encoder.9} parent=23 // pred_check_branch
        %130 = sbr.rel (%p128) target = $region28
      $region27: #{bert_encoder.9} parent=23 // pred_region
        %p131 = scmp.lt.s32.totalorder %s9, 1
        %s132 = scalar_select %p131, %s9, 1
        %s133 = smul.addr %s132, 8
        %s134 = scalar_lea.vmem %s0, %s133
      $region28: #{bert_encoder.9} parent=23 // pred_fallthru
        _
    $region24: #{bert_encoder.9} parent=5 // pred_fallthru
      _
    %p135 = scmp.le.s32.totalorder 1, %s9
    %p136 = scmp.lt.s32.totalorder %s9, 3
    %p137 = pnand %p135, %p136
    %p138 = pneg %p137
    // Predicated region
    $region29: #{bert_encoder.9} parent=5 // pred_check
      _
    $region30: #{bert_encoder.9} parent=5 // pred_check_branch
      %140 = sbr.rel (%p137) target = $region32
    $region31: #{bert_encoder.9} parent=5 // pred_region
      %s141 = ssub.s32 %s9, 1
      %p142 = scmp.lt.s32.totalorder %s14, 1
      %s143 = scalar_select %p142, %s14, 1
      %s144 = smul.addr %s143, 8
      %s145 = scalar_lea.vmem %s0, %s144
      %p146 = pneg %p35
      %p147 = pneg %p32
      %p148 = pneg %p56
      %p149 = pneg %p53
      %p150 = pneg %p77
      %p151 = pneg %p74
      %p152 = pneg %p103
      %p153 = pneg %p100
      %p154 = scmp.lt.s32.totalorder %s14, 1
      %s155 = scalar_select %p154, %s14, 1
      %s156 = smul.addr %s155, 8
      %s157 = scalar_lea.vmem %s3, %s156
      %p158 = scmp.lt.s32.totalorder %s14, 1
      %s159 = scalar_select %p158, %s14, 1
      %s160 = smul.addr %s159, 8
      %s161 = scalar_lea.vmem %s0, %s160
      %p162 = scmp.lt.s32.totalorder %s14, 1
      %s163 = scalar_select %p162, %s14, 1
      %s164 = smul.addr %s163, 8
      %s165 = scalar_lea.vmem %s3, %s164
      %v166 = vld [vmem:[%s161] sm:$0xff]
      %v167 = vld [vmem:[%s1] sm:$0x1]
      %v168 = vld [vmem:[%s2] sm:$0x1]
      %169 = vadd.xlane.f32.xlu0 %v166
      %v170 = vpop.xlane.xlu0 %169
      %v171 = vrcp.pop 128.0
      %v172 = vmul.f32 %v170, %v171
      %v173 = vsub.f32 %v166, %v172
      %v174 = vmul.f32 %v173, %v173
      %175 = vadd.xlane.f32.xlu0 %v174
      %v176 = vpop.xlane.xlu0 %175
      %v177 = vmul.f32 %v176, %v171
      %v178 = vadd.f32 %v177, 1e-12
      %v179 = vrsqrt.pop %v178
      %v180 = vmul.f32 %v173, %v179
      %v182 = vlaneseq
      %v183 = vshrl.u32 %v182, 7
      %v184 = vsub.s32 0, %v183
      %v185 = vrot.slane %v167, %v184
      %v187 = vmul.f32 %v180, %v185
      %v189 = vlaneseq
      %v190 = vshrl.u32 %v189, 7
      %v191 = vsub.s32 0, %v190
      %v192 = vrot.slane %v168, %v191
      %v194 = vadd.f32 %v187, %v192
      %195 = vst [vmem:[%s165] sm:$0xff] %v194
      %p196 = scmp.lt.s32.totalorder %s14, 1
      %s197 = scalar_select %p196, %s14, 1
      %s198 = smul.addr %s197, 8
      %s199 = scalar_lea.vmem %s3, %s198
      // Predicated region
      $region33: #{bert_encoder.9} parent=31 // pred_check
        %p200 = pneg %p100
      $region34: #{bert_encoder.9} parent=31 // pred_check_branch
        %202 = sbr.rel (%p200) target = $region36
      $region35: #{bert_encoder.9} parent=31 // pred_region
        _
      $region36: #{bert_encoder.9} parent=31 // pred_fallthru
        _
    $region32: #{bert_encoder.9} parent=5 // pred_fallthru
      _
    %p203 = scmp.le.s32.totalorder 2, %s9
    // Predicated region
    $region37: #{bert_encoder.9} parent=5 // pred_check
      %p204 = pneg %p203
    $region38: #{bert_encoder.9} parent=5 // pred_check_branch
      %206 = sbr.rel (%p204) target = $region40
    $region39: #{bert_encoder.9} parent=5 // pred_region
      %s207 = ssub.s32 %s9, 2
      // Predicated region
      $region41: #{bert_encoder.9} parent=39 // pred_check
        %p208 = pneg %p106
      $region42: #{bert_encoder.9} parent=39 // pred_check_branch
        %210 = sbr.rel (%p208) target = $region44
      $region43: #{bert_encoder.9} parent=39 // pred_region
        %p211 = scmp.lt.s32.totalorder %s15, 1
        %s212 = scalar_select %p211, %s15, 1
        %s213 = smul.addr %s212, 8
        %s214 = scalar_lea.vmem %s3, %s213
      $region44: #{bert_encoder.9} parent=39 // pred_fallthru
        _
    $region40: #{bert_encoder.9} parent=5 // pred_fallthru
      _
  $region6: #{bert_encoder.9} parent=0 // loop_footer
    %s13 = sadd.s32 1, %s9
  $region7: #{bert_encoder.9} parent=0 // loop_footer_branch
    %8 = sbr.rel target = $region3
  $region8: #{bert_encoder.9} parent=0 // loop_exit
    _

// kernel: bert_encoder.10
$region0: #{bert_encoder.10}
  #allocation0 [shape = 'u32[]', space=smem, size = 0x4, offset = 0x4, fixed_abs, tag = 'smem constant byte address 0x4 - core index']
  #allocation1 [shape = 'u32[144,128]{1,0:T(1,128)}', space=vmem, size = 0x12000, scoped, tag = 'internal scratch']
  %s0 = inlined_call_operand.vmem [shape: f32[16,128], index: 0, kind: input, shape index: {}]
  %s1 = inlined_call_operand.vmem [shape: bf16[128,384], index: 1, kind: input, shape index: {}]
  %s2 = inlined_call_operand.vmem [shape: f32[1,384], index: 2, kind: input, shape index: {}]
  %s3 = inlined_call_operand.vmem [shape: f32[16,384], index: 3, kind: output, shape index: {}]
  %s4 = sld [smem:[#allocation0]]
  $region45: #{bert_encoder.10} parent=0
    _
  %s6 = ssub.s32 1, %s4
  %s7 = scalar_select 0, %s6, %s4
  loop: start=0, step=1, limit=4
  $region2: #{bert_encoder.10} parent=0 // loop_pre_header
    _
  $region3: #{bert_encoder.10} parent=0 // loop_header
    %s9 = sphi 0, %s13
    %p10 = scmp.ge.s32.totalorder %s9, 4
    %s19 = sphi 0, %s21
    %s22 = sphi 0, %s19
    %s23 = sphi 0, %s22
    %s39 = sphi 0, %s23
    %s43 = sphi 0, %s43
    %s45 = sphi 0, %s43
    %s46 = sphi 0, %s45
    %s60 = sphi 0, %s46
    %s64 = sphi 0, %s64
    %s66 = sphi 0, %s64
    %s67 = sphi 0, %s66
    %s81 = sphi 0, %s67
    %s87 = sphi 0, %s89
    %s90 = sphi 0, %s87
    %s91 = sphi 0, %s90
    %s107 = sphi 0, %s91
  $region4: #{bert_encoder.10} parent=0 // loop_header_branch
    %12 = sbr.rel (%p10) target = $region8
  $region5: #{bert_encoder.10} parent=0 // loop_body
    %s14 = ssub.s32 %s9, 1
    %s15 = ssub.s32 %s9, 2
    %s16 = sadd.s32 %s9, 1
    %s17 = ssub.s32 %s9, %s16
    %p18 = scmp.eq.s32.totalorder %s17, 0
    %s20 = sadd.s32 %s19, 1
    %s21 = scalar_select %p18, %s19, %s20
    %p24 = pneg %p18
    %p25 = scmp.eq.s32.totalorder %s9, 1
    %p26 = por %p24, %p25
    %p27 = scmp.ne.s32.totalorder %s19, %s22
    %p28 = scmp.eq.s32.totalorder %s9, 0
    %p29 = por %p27, %p28
    %p30 = scmp.ne.s32.totalorder %s19, %s22
    %p31 = scmp.eq.s32.totalorder %s14, 1
    %p32 = por %p30, %p31
    %p33 = scmp.ne.s32.totalorder %s22, %s23
    %p34 = scmp.eq.s32.totalorder %s14, 0
    %p35 = por %p33, %p34
    %p36 = scmp.ne.s32.totalorder %s22, %s23
    %p37 = scmp.eq.s32.totalorder %s15, 1
    %p38 = por %p36, %p37
    %p40 = scmp.ne.s32.totalorder %s23, %s39
    %p41 = scmp.eq.s32.totalorder %s15, 0
    %p42 = por %p40, %p41
    %s44 = sadd.s32 %s43, 1
    %p47 = scmp.eq.s32.totalorder %s9, 1
    %p48 = scmp.ne.s32.totalorder %s43, %s45
    %p49 = scmp.eq.s32.totalorder %s9, 0
    %p50 = por %p48, %p49
    %p51 = scmp.ne.s32.totalorder %s43, %s45
    %p52 = scmp.eq.s32.totalorder %s14, 1
    %p53 = por %p51, %p52
    %p54 = scmp.ne.s32.totalorder %s45, %s46
    %p55 = scmp.eq.s32.totalorder %s14, 0
    %p56 = por %p54, %p55
    %p57 = scmp.ne.s32.totalorder %s45, %s46
    %p58 = scmp.eq.s32.totalorder %s15, 1
    %p59 = por %p57, %p58
    %p61 = scmp.ne.s32.totalorder %s46, %s60
    %p62 = scmp.eq.s32.totalorder %s15, 0
    %p63 = por %p61, %p62
    %s65 = sadd.s32 %s64, 1
    %p68 = scmp.eq.s32.totalorder %s9, 1
    %p69 = scmp.ne.s32.totalorder %s64, %s66
    %p70 = scmp.eq.s32.totalorder %s9, 0
    %p71 = por %p69, %p70
    %p72 = scmp.ne.s32.totalorder %s64, %s66
    %p73 = scmp.eq.s32.totalorder %s14, 1
    %p74 = por %p72, %p73
    %p75 = scmp.ne.s32.totalorder %s66, %s67
    %p76 = scmp.eq.s32.totalorder %s14, 0
    %p77 = por %p75, %p76
    %p78 = scmp.ne.s32.totalorder %s66, %s67
    %p79 = scmp.eq.s32.totalorder %s15, 1
    %p80 = por %p78, %p79
    %p82 = scmp.ne.s32.totalorder %s67, %s81
    %p83 = scmp.eq.s32.totalorder %s15, 0
    %p84 = por %p82, %p83
    %s85 = ssub.s32 %s9, %s16
    %p86 = scmp.eq.s32.totalorder %s85, 0
    %s88 = sadd.s32 %s87, 1
    %s89 = scalar_select %p86, %s87, %s88
    %p92 = pneg %p86
    %p93 = scmp.eq.s32.totalorder %s9, 1
    %p94 = por %p92, %p93
    %p95 = scmp.ne.s32.totalorder %s87, %s90
    %p96 = scmp.eq.s32.totalorder %s9, 0
    %p97 = por %p95, %p96
    %p98 = scmp.ne.s32.totalorder %s87, %s90
    %p99 = scmp.eq.s32.totalorder %s14, 1
    %p100 = por %p98, %p99
    %p101 = scmp.ne.s32.totalorder %s90, %s91
    %p102 = scmp.eq.s32.totalorder %s14, 0
    %p103 = por %p101, %p102
    %p104 = scmp.ne.s32.totalorder %s90, %s91
    %p105 = scmp.eq.s32.totalorder %s15, 1
    %p106 = por %p104, %p105
    %p108 = scmp.ne.s32.totalorder %s91, %s107
    %p109 = scmp.eq.s32.totalorder %s15, 0
    %p110 = por %p108, %p109
    %p111 = scmp.le.s32.totalorder 1, %s9
    %p112 = scmp.lt.s32.totalorder %s9, 3
    %p113 = pnand %p111, %p112
    %p114 = pneg %p113
    // Predicated region
    $region9: #{bert_encoder.10} parent=5 // pred_check
      _
    $region10: #{bert_encoder.10} parent=5 // pred_check_branch
      %116 = sbr.rel (%p113) target = $region12
    $region11: #{bert_encoder.10} parent=5 // pred_region
      %s117 = ssub.s32 %s9, 1
      // Predicated region
      $region13: #{bert_encoder.10} parent=11 // pred_check
        %p118 = pneg %p56
      $region14: #{bert_encoder.10} parent=11 // pred_check_branch
        %120 = sbr.rel (%p118) target = $region16
      $region15: #{bert_encoder.10} parent=11 // pred_region
        _
      $region16: #{bert_encoder.10} parent=11 // pred_fallthru
        _
      // Predicated region
      $region17: #{bert_encoder.10} parent=11 // pred_check
        %p121 = pneg %p77
      $region18: #{bert_encoder.10} parent=11 // pred_check_branch
        %123 = sbr.rel (%p121) target = $region20
      $region19: #{bert_encoder.10} parent=11 // pred_region
        _
      $region20: #{bert_encoder.10} parent=11 // pred_fallthru
        _
    $region12: #{bert_encoder.10} parent=5 // pred_fallthru
      _
    %p124 = scmp.lt.s32.totalorder %s9, 2
    // Predicated region
    $region21: #{bert_encoder.10} parent=5 // pred_check
      %p125 = pneg %p124
    $region22: #{bert_encoder.10} parent=5 // pred_check_branch
      %127 = sbr.rel (%p125) target = $region24
    $region23: #{bert_encoder.10} parent=5 // pred_region
      // Predicated region
      $region25: #{bert_encoder.10} parent=23 // pred_check
        %p128 = pneg %p29
      $region26: #{bert_encoder.10} parent=23 // pred_check_branch
        %130 = sbr.rel (%p128) target = $region28
      $region27: #{bert_encoder.10} parent=23 // pred_region
        %p131 = scmp.lt.s32.totalorder %s9, 1
        %s132 = scalar_select %p131, %s9, 1
        %s133 = smul.addr %s132, 8
        %s134 = scalar_lea.vmem %s0, %s133
      $region28: #{bert_encoder.10} parent=23 // pred_fallthru
        _
    $region24: #{bert_encoder.10} parent=5 // pred_fallthru
      _
    %p135 = scmp.le.s32.totalorder 1, %s9
    %p136 = scmp.lt.s32.totalorder %s9, 3
    %p137 = pnand %p135, %p136
    %p138 = pneg %p137
    // Predicated region
    $region29: #{bert_encoder.10} parent=5 // pred_check
      _
    $region30: #{bert_encoder.10} parent=5 // pred_check_branch
      %140 = sbr.rel (%p137) target = $region32
    $region31: #{bert_encoder.10} parent=5 // pred_region
      %s141 = ssub.s32 %s9, 1
      %p142 = scmp.lt.s32.totalorder %s14, 1
      %s143 = scalar_select %p142, %s14, 1
      %s144 = smul.addr %s143, 8
      %s145 = scalar_lea.vmem %s0, %s144
      %p146 = pneg %p35
      %p147 = pneg %p32
      %p148 = pneg %p56
      %p149 = pneg %p53
      %p150 = pneg %p77
      %p151 = pneg %p74
      %p152 = pneg %p103
      %p153 = pneg %p100
      %p154 = scmp.lt.s32.totalorder %s14, 1
      %s155 = scalar_select %p154, %s14, 1
      %s156 = smul.addr %s155, 3
      %s157 = smul.addr %s156, 8
      %s158 = scalar_lea.vmem %s3, %s157
      %p159 = scmp.lt.s32.totalorder %s14, 1
      %s160 = scalar_select %p159, %s14, 1
      %s161 = smul.addr %s160, 8
      %s162 = scalar_lea.vmem %s0, %s161
      %p163 = scmp.lt.s32.totalorder %s14, 1
      %s164 = scalar_select %p163, %s14, 1
      %s165 = smul.addr %s164, 3
      %s166 = smul.addr %s165, 8
      %s167 = scalar_lea.vmem %s3, %s166
      %v169 = vld [vmem:[%s162] sm:$0xff]
      %v170 = vpack.c.bf16 %v169, %v169
      %v171 = vld [vmem:[%s1] sm:$0xff]
      %v172 = vld [vmem:[%s1 + $0x8] sm:$0xf]
      %v173 = vld [vmem:[%s1 + $0xc] sm:$0xff]
      %v174 = vld [vmem:[%s1 + $0x14] sm:$0xf]
      %v175 = vld [vmem:[%s1 + $0x18] sm:$0xff]
      %v176 = vld [vmem:[%s1 + $0x20] sm:$0xf]
      %v177 = vld [vmem:[%s1 + $0x24] sm:$0xff]
      %v178 = vld [vmem:[%s1 + $0x2c] sm:$0xf]
      %v179 = vld [vmem:[%s1 + $0x30] sm:$0xff]
      %v180 = vld [vmem:[%s1 + $0x38] sm:$0xf]
      %v181 = vld [vmem:[%s1 + $0x3c] sm:$0xff]
      %v182 = vld [vmem:[%s1 + $0x44] sm:$0xf]
      %v183 = vld [vmem:[%s1 + $0x48] sm:$0xff]
      %v184 = vld [vmem:[%s1 + $0x50] sm:$0xf]
      %v185 = vld [vmem:[%s1 + $0x54] sm:$0xff]
      %v186 = vld [vmem:[%s1 + $0x5c] sm:$0xf]
      %v187 = vld [vmem:[%s1 + $0x60] sm:$0xff]
      %v188 = vld [vmem:[%s1 + $0x68] sm:$0xf]
      %v189 = vld [vmem:[%s1 + $0x6c] sm:$0xff]
      %v190 = vld [vmem:[%s1 + $0x74] sm:$0xf]
      %v191 = vld [vmem:[%s1 + $0x78] sm:$0xff]
      %v192 = vld [vmem:[%s1 + $0x80] sm:$0xf]
      %v193 = vld [vmem:[%s1 + $0x84] sm:$0xff]
      %v194 = vld [vmem:[%s1 + $0x8c] sm:$0xf]
      %v195 = vld [vmem:[%s1 + $0x90] sm:$0xff]
      %v196 = vld [vmem:[%s1 + $0x98] sm:$0xf]
      %v197 = vld [vmem:[%s1 + $0x9c] sm:$0xff]
      %v198 = vld [vmem:[%s1 + $0xa4] sm:$0xf]
      %v199 = vld [vmem:[%s1 + $0xa8] sm:$0xff]
      %v200 = vld [vmem:[%s1 + $0xb0] sm:$0xf]
      %v201 = vld [vmem:[%s1 + $0xb4] sm:$0xff]
      %v202 = vld [vmem:[%s1 + $0xbc] sm:$0xf]
      %v203 = vld [vmem:[%s2] sm:$0x7]
      %v205 = vlaneseq
      %v206 = vshrl.u32 %v205, 7
      %v207 = vsub.s32 0, %v206
      %v208 = vrot.slane %v203, %v207
      %v209 = vlaneseq
      %v210 = vshrl.u32 %v209, 7
      %v211 = vsub.s32 1, %v210
      %v212 = vrot.slane %v203, %v211
      %v213 = vlaneseq
      %v214 = vshrl.u32 %v213, 7
      %v215 = vsub.s32 2, %v214
      %v216 = vrot.slane %v203, %v215
      %v252 = vunpack.c.l.b16 %v171
      %v253 = vunpack.c.h.b16 %v171
      %v254 = vunpack.c.l.b16 %v172
      %v255 = vunpack.c.l.b16 %v173
      %v256 = vunpack.c.h.b16 %v173
      %v257 = vunpack.c.l.b16 %v174
      %v258 = vunpack.c.l.b16 %v175
      %v259 = vunpack.c.h.b16 %v175
      %v260 = vunpack.c.l.b16 %v176
      %v261 = vunpack.c.l.b16 %v177
      %v262 = vunpack.c.h.b16 %v177
      %v263 = vunpack.c.l.b16 %v178
      %v264 = vunpack.c.l.b16 %v179
      %v265 = vunpack.c.h.b16 %v179
      %v266 = vunpack.c.l.b16 %v180
      %v267 = vunpack.c.l.b16 %v181
      %v268 = vunpack.c.h.b16 %v181
      %v269 = vunpack.c.l.b16 %v182
      %v270 = vunpack.c.l.b16 %v183
      %v271 = vunpack.c.h.b16 %v183
      %v272 = vunpack.c.l.b16 %v184
      %v273 = vunpack.c.l.b16 %v185
      %v274 = vunpack.c.h.b16 %v185
      %v275 = vunpack.c.l.b16 %v186
      %v276 = vunpack.c.l.b16 %v187
      %v277 = vunpack.c.h.b16 %v187
      %v278 = vunpack.c.l.b16 %v188
      %v279 = vunpack.c.l.b16 %v189
      %v280 = vunpack.c.h.b16 %v189
      %v281 = vunpack.c.l.b16 %v190
      %v282 = vunpack.c.l.b16 %v191
      %v283 = vunpack.c.h.b16 %v191
      %v284 = vunpack.c.l.b16 %v192
      %v285 = vunpack.c.l.b16 %v193
      %v286 = vunpack.c.h.b16 %v193
      %v287 = vunpack.c.l.b16 %v194
      %v288 = vunpack.c.l.b16 %v195
      %v289 = vunpack.c.h.b16 %v195
      %v290 = vunpack.c.l.b16 %v196
      %v291 = vunpack.c.l.b16 %v197
      %v292 = vunpack.c.h.b16 %v197
      %v293 = vunpack.c.l.b16 %v198
      %v294 = vunpack.c.l.b16 %v199
      %v295 = vunpack.c.h.b16 %v199
      %v296 = vunpack.c.l.b16 %v200
      %v297 = vunpack.c.l.b16 %v201
      %v298 = vunpack.c.h.b16 %v201
      %v299 = vunpack.c.l.b16 %v202
      %v300 = vpack.c.b16 %v255, %v252
      %v301 = vpack.c.b16 %v256, %v253
      %v302 = vpack.c.b16 %v257, %v254
      %v303 = vpack.c.b16 %v261, %v258
      %v304 = vpack.c.b16 %v262, %v259
      %v305 = vpack.c.b16 %v263, %v260
      %v306 = vpack.c.b16 %v267, %v264
      %v307 = vpack.c.b16 %v268, %v265
      %v308 = vpack.c.b16 %v269, %v266
      %v309 = vpack.c.b16 %v273, %v270
      %v310 = vpack.c.b16 %v274, %v271
      %v311 = vpack.c.b16 %v275, %v272
      %v312 = vpack.c.b16 %v279, %v276
      %v313 = vpack.c.b16 %v280, %v277
      %v314 = vpack.c.b16 %v281, %v278
      %v315 = vpack.c.b16 %v285, %v282
      %v316 = vpack.c.b16 %v286, %v283
      %v317 = vpack.c.b16 %v287, %v284
      %v318 = vpack.c.b16 %v291, %v288
      %v319 = vpack.c.b16 %v292, %v289
      %v320 = vpack.c.b16 %v293, %v290
      %v321 = vpack.c.b16 %v297, %v294
      %v322 = vpack.c.b16 %v298, %v295
      %v323 = vpack.c.b16 %v299, %v296
      %348 = vmatprep.subr.bf16.mxu0 %v301
      %349 = vmatpush1.bf16.msra.mxu0 %v300
      %350 = vmatprep.subr.bf16.mxu0 %v304
      %351 = vmatpush1.bf16.msra.mxu0 %v303
      %352 = vmatprep.subr.bf16.mxu0 %v307
      %353 = vmatpush1.bf16.msra.mxu0 %v306
      %354 = vmatprep.subr.bf16.mxu0 %v310
      %355 = vmatpush1.bf16.msra.mxu0 %v309
      %356 = vmatprep.subr.bf16.mxu0 %v313
      %357 = vmatpush1.bf16.msra.mxu0 %v312
      %358 = vmatprep.subr.bf16.mxu0 %v316
      %359 = vmatpush1.bf16.msra.mxu0 %v315
      %360 = vmatprep.subr.bf16.mxu0 %v319
      %361 = vmatpush1.bf16.msra.mxu0 %v318
      %362 = vmatprep.subr.bf16.mxu0 %v322
      %363 = vmatpush1.bf16.msra.mxu0 %v321
      %364 = vmatprep.subr.bf16.mxu0 0
      %365 = vmatpush1.bf16.msra.mxu0 0
      %366 = vmatprep.subr.bf16.mxu0 0
      %367 = vmatpush1.bf16.msra.mxu0 0
      %368 = vmatprep.subr.bf16.mxu0 0
      %369 = vmatpush1.bf16.msra.mxu0 0
      %370 = vmatprep.subr.bf16.mxu0 0
      %371 = vmatpush1.bf16.msra.mxu0 0
      %372 = vmatprep.subr.bf16.mxu0 0
      %373 = vmatpush1.bf16.msra.mxu0 0
      %374 = vmatprep.subr.bf16.mxu0 0
      %375 = vmatpush1.bf16.msra.mxu0 0
      %376 = vmatprep.subr.bf16.mxu0 0
      %377 = vmatpush1.bf16.msra.mxu0 0
      %378 = vmatprep.subr.bf16.mxu0 0
      %379 = vmatpush1.bf16.msra.mxu0 0
      %380 = vmatprep.mubr.bf16.mxu0 0
      %381 = vmatmul.mubr.bf16.gmra.mrb[0].mxu0 %v170
      %v382 = vpop.f32.mrb[0].mxu0
      %v383 = vadd.f32 %v208, %v382
      %v384 = vpop.f32.mrb[0].mxu0
      %v385 = vadd.f32 %v212, %v384
      %v386 = vpop.f32.mrb[0].mxu0
      %v387 = vpop.f32.mrb[0].mxu0
      %388 = vdwg.mxu0
      %389 = vmatprep.subr.bf16.mxu0 0
      %390 = vmatpush1.bf16.msra.mxu0 %v302
      %391 = vmatprep.subr.bf16.mxu0 0
      %392 = vmatpush1.bf16.msra.mxu0 %v305
      %393 = vmatprep.subr.bf16.mxu0 0
      %394 = vmatpush1.bf16.msra.mxu0 %v308
      %395 = vmatprep.subr.bf16.mxu0 0
      %396 = vmatpush1.bf16.msra.mxu0 %v311
      %397 = vmatprep.subr.bf16.mxu0 0
      %398 = vmatpush1.bf16.msra.mxu0 %v314
      %399 = vmatprep.subr.bf16.mxu0 0
      %400 = vmatpush1.bf16.msra.mxu0 %v317
      %401 = vmatprep.subr.bf16.mxu0 0
      %402 = vmatpush1.bf16.msra.mxu0 %v320
      %403 = vmatprep.subr.bf16.mxu0 0
      %404 = vmatpush1.bf16.msra.mxu0 %v323
      %405 = vmatprep.subr.bf16.mxu0 0
      %406 = vmatpush1.bf16.msra.mxu0 0
      %407 = vmatprep.subr.bf16.mxu0 0
      %408 = vmatpush1.bf16.msra.mxu0 0
      %409 = vmatprep.subr.bf16.mxu0 0
      %410 = vmatpush1.bf16.msra.mxu0 0
      %411 = vmatprep.subr.bf16.mxu0 0
      %412 = vmatpush1.bf16.msra.mxu0 0
      %413 = vmatprep.subr.bf16.mxu0 0
      %414 = vmatpush1.bf16.msra.mxu0 0
      %415 = vmatprep.subr.bf16.mxu0 0
      %416 = vmatpush1.bf16.msra.mxu0 0
      %417 = vmatprep.subr.bf16.mxu0 0
      %418 = vmatpush1.bf16.msra.mxu0 0
      %419 = vmatprep.subr.bf16.mxu0 0
      %420 = vmatpush1.bf16.msra.mxu0 0
      %421 = vmatprep.mubr.bf16.mxu0 0
      %422 = vmatmul.mubr.bf16.gmra.mrb[0].mxu0 %v170
      %v423 = vpop.f32.mrb[0].mxu0
      %v424 = vadd.f32 %v216, %v423
      %v425 = vpop.f32.mrb[0].mxu0
      %v426 = vpop.f32.mrb[0].mxu0
      %v427 = vpop.f32.mrb[0].mxu0
      %428 = vdwg.mxu0
      %429 = vst [vmem:[%s167] sm:$0xff] %v383
      %430 = vst [vmem:[%s167 + $0x8] sm:$0xff] %v385
      %431 = vst [vmem:[%s167 + $0x10] sm:$0xff] %v424
      %p432 = scmp.lt.s32.totalorder %s14, 1
      %s433 = scalar_select %p432, %s14, 1
      %s434 = smul.addr %s433, 3
      %s435 = smul.addr %s434, 8
      %s436 = scalar_lea.vmem %s3, %s435
      // Predicated region
      $region33: #{bert_encoder.10} parent=31 // pred_check
        %p437 = pneg %p100
      $region34: #{bert_encoder.10} parent=31 // pred_check_branch
        %439 = sbr.rel (%p437) target = $region36
      $region35: #{bert_encoder.10} parent=31 // pred_region
        _
      $region36: #{bert_encoder.10} parent=31 // pred_fallthru
        _
    $region32: #{bert_encoder.10} parent=5 // pred_fallthru
      _
    %p440 = scmp.le.s32.totalorder 2, %s9
    // Predicated region
    $region37: #{bert_encoder.10} parent=5 // pred_check
      %p441 = pneg %p440
    $region38: #{bert_encoder.10} parent=5 // pred_check_branch
      %443 = sbr.rel (%p441) target = $region40
    $region39: #{bert_encoder.10} parent=5 // pred_region
      %s444 = ssub.s32 %s9, 2
      // Predicated region
      $region41: #{bert_encoder.10} parent=39 // pred_check
        %p445 = pneg %p106
      $region42: #{bert_encoder.10} parent=39 // pred_check_branch
        %447 = sbr.rel (%p445) target = $region44
      $region43: #{bert_encoder.10} parent=39 // pred_region
        %p448 = scmp.lt.s32.totalorder %s15, 1
        %s449 = scalar_select %p448, %s15, 1
        %s450 = smul.addr %s449, 3
        %s451 = smul.addr %s450, 8
        %s452 = scalar_lea.vmem %s3, %s451
      $region44: #{bert_encoder.10} parent=39 // pred_fallthru
        _
    $region40: #{bert_encoder.10} parent=5 // pred_fallthru
      _
  $region6: #{bert_encoder.10} parent=0 // loop_footer
    %s13 = sadd.s32 1, %s9
  $region7: #{bert_encoder.10} parent=0 // loop_footer_branch
    %8 = sbr.rel target = $region3
  $region8: #{bert_encoder.10} parent=0 // loop_exit
    _

// kernel: bert_encoder.12
$region0: #{bert_encoder.12}
  #allocation0 [shape = 'u32[]', space=smem, size = 0x4, offset = 0x4, fixed_abs, tag = 'smem constant byte address 0x4 - core index']
  #allocation1 [shape = 'u32[144,128]{1,0:T(1,128)}', space=vmem, size = 0x12000, scoped, tag = 'internal scratch']
  %s0 = inlined_call_operand.vmem [shape: f32[16,128], index: 0, kind: input, shape index: {}]
  %s1 = inlined_call_operand.vmem [shape: f32[16,128], index: 1, kind: input, shape index: {}, may-alias: {1,6}]
  %s2 = inlined_call_operand.vmem [shape: bf16[128,128], index: 2, kind: input, shape index: {}]
  %s3 = inlined_call_operand.vmem [shape: f32[1,128], index: 3, kind: input, shape index: {}]
  %s4 = inlined_call_operand.vmem [shape: f32[1,128], index: 4, kind: input, shape index: {}]
  %s5 = inlined_call_operand.vmem [shape: f32[1,128], index: 5, kind: input, shape index: {}]
  %s6 = inlined_call_operand.vmem [shape: f32[16,128], index: 6, kind: output, shape index: {}, may-alias: {1,6}]
  %s7 = sld [smem:[#allocation0]]
  $region57: #{bert_encoder.12} parent=0
    _
  %s9 = ssub.s32 1, %s7
  %s10 = scalar_select 0, %s9, %s7
  loop: start=0, step=1, limit=4
  $region2: #{bert_encoder.12} parent=0 // loop_pre_header
    _
  $region3: #{bert_encoder.12} parent=0 // loop_header
    %s12 = sphi 0, %s16
    %p13 = scmp.ge.s32.totalorder %s12, 4
    %s22 = sphi 0, %s24
    %s25 = sphi 0, %s22
    %s26 = sphi 0, %s25
    %s42 = sphi 0, %s26
    %s48 = sphi 0, %s50
    %s51 = sphi 0, %s48
    %s52 = sphi 0, %s51
    %s68 = sphi 0, %s52
    %s72 = sphi 0, %s72
    %s74 = sphi 0, %s72
    %s75 = sphi 0, %s74
    %s89 = sphi 0, %s75
    %s93 = sphi 0, %s93
    %s95 = sphi 0, %s93
    %s96 = sphi 0, %s95
    %s110 = sphi 0, %s96
    %s114 = sphi 0, %s114
    %s116 = sphi 0, %s114
    %s117 = sphi 0, %s116
    %s131 = sphi 0, %s117
    %s135 = sphi 0, %s135
    %s137 = sphi 0, %s135
    %s138 = sphi 0, %s137
    %s152 = sphi 0, %s138
    %s158 = sphi 0, %s160
    %s161 = sphi 0, %s158
    %s162 = sphi 0, %s161
    %s178 = sphi 0, %s162
  $region4: #{bert_encoder.12} parent=0 // loop_header_branch
    %15 = sbr.rel (%p13) target = $region8
  $region5: #{bert_encoder.12} parent=0 // loop_body
    %s17 = ssub.s32 %s12, 1
    %s18 = ssub.s32 %s12, 2
    %s19 = sadd.s32 %s12, 1
    %s20 = ssub.s32 %s12, %s19
    %p21 = scmp.eq.s32.totalorder %s20, 0
    %s23 = sadd.s32 %s22, 1
    %s24 = scalar_select %p21, %s22, %s23
    %p27 = pneg %p21
    %p28 = scmp.eq.s32.totalorder %s12, 1
    %p29 = por %p27, %p28
    %p30 = scmp.ne.s32.totalorder %s22, %s25
    %p31 = scmp.eq.s32.totalorder %s12, 0
    %p32 = por %p30, %p31
    %p33 = scmp.ne.s32.totalorder %s22, %s25
    %p34 = scmp.eq.s32.totalorder %s17, 1
    %p35 = por %p33, %p34
    %p36 = scmp.ne.s32.totalorder %s25, %s26
    %p37 = scmp.eq.s32.totalorder %s17, 0
    %p38 = por %p36, %p37
    %p39 = scmp.ne.s32.totalorder %s25, %s26
    %p40 = scmp.eq.s32.totalorder %s18, 1
    %p41 = por %p39, %p40
    %p43 = scmp.ne.s32.totalorder %s26, %s42
    %p44 = scmp.eq.s32.totalorder %s18, 0
    %p45 = por %p43, %p44
    %s46 = ssub.s32 %s12, %s19
    %p47 = scmp.eq.s32.totalorder %s46, 0
    %s49 = sadd.s32 %s48, 1
    %s50 = scalar_select %p47, %s48, %s49
    %p53 = pneg %p47
    %p54 = scmp.eq.s32.totalorder %s12, 1
    %p55 = por %p53, %p54
    %p56 = scmp.ne.s32.totalorder %s48, %s51
    %p57 = scmp.eq.s32.totalorder %s12, 0
    %p58 = por %p56, %p57
    %p59 = scmp.ne.s32.totalorder %s48, %s51
    %p60 = scmp.eq.s32.totalorder %s17, 1
    %p61 = por %p59, %p60
    %p62 = scmp.ne.s32.totalorder %s51, %s52
    %p63 = scmp.eq.s32.totalorder %s17, 0
    %p64 = por %p62, %p63
    %p65 = scmp.ne.s32.totalorder %s51, %s52
    %p66 = scmp.eq.s32.totalorder %s18, 1
    %p67 = por %p65, %p66
    %p69 = scmp.ne.s32.totalorder %s52, %s68
    %p70 = scmp.eq.s32.totalorder %s18, 0
    %p71 = por %p69, %p70
    %s73 = sadd.s32 %s72, 1
    %p76 = scmp.eq.s32.totalorder %s12, 1
    %p77 = scmp.ne.s32.totalorder %s72, %s74
    %p78 = scmp.eq.s32.totalorder %s12, 0
    %p79 = por %p77, %p78
    %p80 = scmp.ne.s32.totalorder %s72, %s74
    %p81 = scmp.eq.s32.totalorder %s17, 1
    %p82 = por %p80, %p81
    %p83 = scmp.ne.s32.totalorder %s74, %s75
    %p84 = scmp.eq.s32.totalorder %s17, 0
    %p85 = por %p83, %p84
    %p86 = scmp.ne.s32.totalorder %s74, %s75
    %p87 = scmp.eq.s32.totalorder %s18, 1
    %p88 = por %p86, %p87
    %p90 = scmp.ne.s32.totalorder %s75, %s89
    %p91 = scmp.eq.s32.totalorder %s18, 0
    %p92 = por %p90, %p91
    %s94 = sadd.s32 %s93, 1
    %p97 = scmp.eq.s32.totalorder %s12, 1
    %p98 = scmp.ne.s32.totalorder %s93, %s95
    %p99 = scmp.eq.s32.totalorder %s12, 0
    %p100 = por %p98, %p99
    %p101 = scmp.ne.s32.totalorder %s93, %s95
    %p102 = scmp.eq.s32.totalorder %s17, 1
    %p103 = por %p101, %p102
    %p104 = scmp.ne.s32.totalorder %s95, %s96
    %p105 = scmp.eq.s32.totalorder %s17, 0
    %p106 = por %p104, %p105
    %p107 = scmp.ne.s32.totalorder %s95, %s96
    %p108 = scmp.eq.s32.totalorder %s18, 1
    %p109 = por %p107, %p108
    %p111 = scmp.ne.s32.totalorder %s96, %s110
    %p112 = scmp.eq.s32.totalorder %s18, 0
    %p113 = por %p111, %p112
    %s115 = sadd.s32 %s114, 1
    %p118 = scmp.eq.s32.totalorder %s12, 1
    %p119 = scmp.ne.s32.totalorder %s114, %s116
    %p120 = scmp.eq.s32.totalorder %s12, 0
    %p121 = por %p119, %p120
    %p122 = scmp.ne.s32.totalorder %s114, %s116
    %p123 = scmp.eq.s32.totalorder %s17, 1
    %p124 = por %p122, %p123
    %p125 = scmp.ne.s32.totalorder %s116, %s117
    %p126 = scmp.eq.s32.totalorder %s17, 0
    %p127 = por %p125, %p126
    %p128 = scmp.ne.s32.totalorder %s116, %s117
    %p129 = scmp.eq.s32.totalorder %s18, 1
    %p130 = por %p128, %p129
    %p132 = scmp.ne.s32.totalorder %s117, %s131
    %p133 = scmp.eq.s32.totalorder %s18, 0
    %p134 = por %p132, %p133
    %s136 = sadd.s32 %s135, 1
    %p139 = scmp.eq.s32.totalorder %s12, 1
    %p140 = scmp.ne.s32.totalorder %s135, %s137
    %p141 = scmp.eq.s32.totalorder %s12, 0
    %p142 = por %p140, %p141
    %p143 = scmp.ne.s32.totalorder %s135, %s137
    %p144 = scmp.eq.s32.totalorder %s17, 1
    %p145 = por %p143, %p144
    %p146 = scmp.ne.s32.totalorder %s137, %s138
    %p147 = scmp.eq.s32.totalorder %s17, 0
    %p148 = por %p146, %p147
    %p149 = scmp.ne.s32.totalorder %s137, %s138
    %p150 = scmp.eq.s32.totalorder %s18, 1
    %p151 = por %p149, %p150
    %p153 = scmp.ne.s32.totalorder %s138, %s152
    %p154 = scmp.eq.s32.totalorder %s18, 0
    %p155 = por %p153, %p154
    %s156 = ssub.s32 %s12, %s19
    %p157 = scmp.eq.s32.totalorder %s156, 0
    %s159 = sadd.s32 %s158, 1
    %s160 = scalar_select %p157, %s158, %s159
    %p163 = pneg %p157
    %p164 = scmp.eq.s32.totalorder %s12, 1
    %p165 = por %p163, %p164
    %p166 = scmp.ne.s32.totalorder %s158, %s161
    %p167 = scmp.eq.s32.totalorder %s12, 0
    %p168 = por %p166, %p167
    %p169 = scmp.ne.s32.totalorder %s158, %s161
    %p170 = scmp.eq.s32.totalorder %s17, 1
    %p171 = por %p169, %p170
    %p172 = scmp.ne.s32.totalorder %s161, %s162
    %p173 = scmp.eq.s32.totalorder %s17, 0
    %p174 = por %p172, %p173
    %p175 = scmp.ne.s32.totalorder %s161, %s162
    %p176 = scmp.eq.s32.totalorder %s18, 1
    %p177 = por %p175, %p176
    %p179 = scmp.ne.s32.totalorder %s162, %s178
    %p180 = scmp.eq.s32.totalorder %s18, 0
    %p181 = por %p179, %p180
    %p182 = scmp.le.s32.totalorder 1, %s12
    %p183 = scmp.lt.s32.totalorder %s12, 3
    %p184 = pnand %p182, %p183
    %p185 = pneg %p184
    // Predicated region
    $region9: #{bert_encoder.12} parent=5 // pred_check
      _
    $region10: #{bert_encoder.12} parent=5 // pred_check_branch
      %187 = sbr.rel (%p184) target = $region12
    $region11: #{bert_encoder.12} parent=5 // pred_region
      %s188 = ssub.s32 %s12, 1
      // Predicated region
      $region13: #{bert_encoder.12} parent=11 // pred_check
        %p189 = pneg %p85
      $region14: #{bert_encoder.12} parent=11 // pred_check_branch
        %191 = sbr.rel (%p189) target = $region16
      $region15: #{bert_encoder.12} parent=11 // pred_region
        _
      $region16: #{bert_encoder.12} parent=11 // pred_fallthru
        _
      // Predicated region
      $region17: #{bert_encoder.12} parent=11 // pred_check
        %p192 = pneg %p106
      $region18: #{bert_encoder.12} parent=11 // pred_check_branch
        %194 = sbr.rel (%p192) target = $region20
      $region19: #{bert_encoder.12} parent=11 // pred_region
        _
      $region20: #{bert_encoder.12} parent=11 // pred_fallthru
        _
      // Predicated region
      $region21: #{bert_encoder.12} parent=11 // pred_check
        %p195 = pneg %p127
      $region22: #{bert_encoder.12} parent=11 // pred_check_branch
        %197 = sbr.rel (%p195) target = $region24
      $region23: #{bert_encoder.12} parent=11 // pred_region
        _
      $region24: #{bert_encoder.12} parent=11 // pred_fallthru
        _
      // Predicated region
      $region25: #{bert_encoder.12} parent=11 // pred_check
        %p198 = pneg %p148
      $region26: #{bert_encoder.12} parent=11 // pred_check_branch
        %200 = sbr.rel (%p198) target = $region28
      $region27: #{bert_encoder.12} parent=11 // pred_region
        _
      $region28: #{bert_encoder.12} parent=11 // pred_fallthru
        _
    $region12: #{bert_encoder.12} parent=5 // pred_fallthru
      _
    %p201 = scmp.lt.s32.totalorder %s12, 2
    // Predicated region
    $region29: #{bert_encoder.12} parent=5 // pred_check
      %p202 = pneg %p201
    $region30: #{bert_encoder.12} parent=5 // pred_check_branch
      %204 = sbr.rel (%p202) target = $region32
    $region31: #{bert_encoder.12} parent=5 // pred_region
      // Predicated region
      $region33: #{bert_encoder.12} parent=31 // pred_check
        %p205 = pneg %p32
      $region34: #{bert_encoder.12} parent=31 // pred_check_branch
        %207 = sbr.rel (%p205) target = $region36
      $region35: #{bert_encoder.12} parent=31 // pred_region
        %p208 = scmp.lt.s32.totalorder %s12, 1
        %s209 = scalar_select %p208, %s12, 1
        %s210 = smul.addr %s209, 8
        %s211 = scalar_lea.vmem %s0, %s210
      $region36: #{bert_encoder.12} parent=31 // pred_fallthru
        _
      // Predicated region
      $region37: #{bert_encoder.12} parent=31 // pred_check
        %p212 = pneg %p58
      $region38: #{bert_encoder.12} parent=31 // pred_check_branch
        %214 = sbr.rel (%p212) target = $region40
      $region39: #{bert_encoder.12} parent=31 // pred_region
        %p215 = scmp.lt.s32.totalorder %s12, 1
        %s216 = scalar_select %p215, %s12, 1
        %s217 = smul.addr %s216, 8
        %s218 = scalar_lea.vmem %s1, %s217
      $region40: #{bert_encoder.12} parent=31 // pred_fallthru
        _
    $region32: #{bert_encoder.12} parent=5 // pred_fallthru
      _
    %p219 = scmp.le.s32.totalorder 1, %s12
    %p220 = scmp.lt.s32.totalorder %s12, 3
    %p221 = pnand %p219, %p220
    %p222 = pneg %p221
    // Predicated region
    $region41: #{bert_encoder.12} parent=5 // pred_check
      _
    $region42: #{bert_encoder.12} parent=5 // pred_check_branch
      %224 = sbr.rel (%p221) target = $region44
    $region43: #{bert_encoder.12} parent=5 // pred_region
      %s225 = ssub.s32 %s12, 1
      %p226 = scmp.lt.s32.totalorder %s17, 1
      %s227 = scalar_select %p226, %s17, 1
      %s228 = smul.addr %s227, 8
      %s229 = scalar_lea.vmem %s0, %s228
      %p230 = pneg %p38
      %p231 = pneg %p35
      %p232 = scmp.lt.s32.totalorder %s17, 1
      %s233 = scalar_select %p232, %s17, 1
      %s234 = smul.addr %s233, 8
      %s235 = scalar_lea.vmem %s1, %s234
      %p236 = pneg %p64
      %p237 = pneg %p61
      %p238 = pneg %p85
      %p239 = pneg %p82
      %p240 = pneg %p106
      %p241 = pneg %p103
      %p242 = pneg %p127
      %p243 = pneg %p124
      %p244 = pneg %p148
      %p245 = pneg %p145
      %p246 = pneg %p174
      %p247 = pneg %p171
      %p248 = scmp.lt.s32.totalorder %s17, 1
      %s249 = scalar_select %p248, %s17, 1
      %s250 = smul.addr %s249, 8
      %s251 = scalar_lea.vmem %s6, %s250
      %p252 = scmp.lt.s32.totalorder %s17, 1
      %s253 = scalar_select %p252, %s17, 1
      %s254 = smul.addr %s253, 8
      %s255 = scalar_lea.vmem %s0, %s254
      %p256 = scmp.lt.s32.totalorder %s17, 1
      %s257 = scalar_select %p256, %s17, 1
      %s258 = smul.addr %s257, 8
      %s259 = scalar_lea.vmem %s1, %s258
      %p260 = scmp.lt.s32.totalorder %s17, 1
      %s261 = scalar_select %p260, %s17, 1
      %s262 = smul.addr %s261, 8
      %s263 = scalar_lea.vmem %s6, %s262
      %v265 = vld [vmem:[%s255] sm:$0xff]
      %v266 = vpack.c.bf16 %v265, %v265
      %v267 = vld [vmem:[%s2] sm:$0xf]
      %v268 = vld [vmem:[%s2 + $0x4] sm:$0xf]
      %v269 = vld [vmem:[%s2 + $0x8] sm:$0xf]
      %v270 = vld [vmem:[%s2 + $0xc] sm:$0xf]
      %v271 = vld [vmem:[%s2 + $0x10] sm:$0xf]
      %v272 = vld [vmem:[%s2 + $0x14] sm:$0xf]
      %v273 = vld [vmem:[%s2 + $0x18] sm:$0xf]
      %v274 = vld [vmem:[%s2 + $0x1c] sm:$0xf]
      %v275 = vld [vmem:[%s2 + $0x20] sm:$0xf]
      %v276 = vld [vmem:[%s2 + $0x24] sm:$0xf]
      %v277 = vld [vmem:[%s2 + $0x28] sm:$0xf]
      %v278 = vld [vmem:[%s2 + $0x2c] sm:$0xf]
      %v279 = vld [vmem:[%s2 + $0x30] sm:$0xf]
      %v280 = vld [vmem:[%s2 + $0x34] sm:$0xf]
      %v281 = vld [vmem:[%s2 + $0x38] sm:$0xf]
      %v282 = vld [vmem:[%s2 + $0x3c] sm:$0xf]
      %v283 = vld [vmem:[%s3] sm:$0x1]
      %v285 = vlaneseq
      %v286 = vshrl.u32 %v285, 7
      %v287 = vsub.s32 0, %v286
      %v288 = vrot.slane %v283, %v287
      %v306 = vunpack.c.l.b16 %v267
      %v307 = vunpack.c.l.b16 %v268
      %v308 = vunpack.c.l.b16 %v269
      %v309 = vunpack.c.l.b16 %v270
      %v310 = vunpack.c.l.b16 %v271
      %v311 = vunpack.c.l.b16 %v272
      %v312 = vunpack.c.l.b16 %v273
      %v313 = vunpack.c.l.b16 %v274
      %v314 = vunpack.c.l.b16 %v275
      %v315 = vunpack.c.l.b16 %v276
      %v316 = vunpack.c.l.b16 %v277
      %v317 = vunpack.c.l.b16 %v278
      %v318 = vunpack.c.l.b16 %v279
      %v319 = vunpack.c.l.b16 %v280
      %v320 = vunpack.c.l.b16 %v281
      %v321 = vunpack.c.l.b16 %v282
      %v322 = vpack.c.b16 %v307, %v306
      %v323 = vpack.c.b16 %v309, %v308
      %v324 = vpack.c.b16 %v311, %v310
      %v325 = vpack.c.b16 %v313, %v312
      %v326 = vpack.c.b16 %v315, %v314
      %v327 = vpack.c.b16 %v317, %v316
      %v328 = vpack.c.b16 %v319, %v318
      %v329 = vpack.c.b16 %v321, %v320
      %338 = vmatprep.subr.bf16.mxu0 0
      %339 = vmatpush1.bf16.msra.mxu0 %v322
      %340 = vmatprep.subr.bf16.mxu0 0
      %341 = vmatpush1.bf16.msra.mxu0 %v323
      %342 = vmatprep.subr.bf16.mxu0 0
      %343 = vmatpush1.bf16.msra.mxu0 %v324
      %344 = vmatprep.subr.bf16.mxu0 0
      %345 = vmatpush1.bf16.msra.mxu0 %v325
      %346 = vmatprep.subr.bf16.mxu0 0
      %347 = vmatpush1.bf16.msra.mxu0 %v326
      %348 = vmatprep.subr.bf16.mxu0 0
      %349 = vmatpush1.bf16.msra.mxu0 %v327
      %350 = vmatprep.subr.bf16.mxu0 0
      %351 = vmatpush1.bf16.msra.mxu0 %v328
      %352 = vmatprep.subr.bf16.mxu0 0
      %353 = vmatpush1.bf16.msra.mxu0 %v329
      %354 = vmatprep.subr.bf16.mxu0 0
      %355 = vmatpush1.bf16.msra.mxu0 0
      %356 = vmatprep.subr.bf16.mxu0 0
      %357 = vmatpush1.bf16.msra.mxu0 0
      %358 = vmatprep.subr.bf16.mxu0 0
      %359 = vmatpush1.bf16.msra.mxu0 0
      %360 = vmatprep.subr.bf16.mxu0 0
      %361 = vmatpush1.bf16.msra.mxu0 0
      %362 = vmatprep.subr.bf16.mxu0 0
      %363 = vmatpush1.bf16.msra.mxu0 0
      %364 = vmatprep.subr.bf16.mxu0 0
      %365 = vmatpush1.bf16.msra.mxu0 0
      %366 = vmatprep.subr.bf16.mxu0 0
      %367 = vmatpush1.bf16.msra.mxu0 0
      %368 = vmatprep.subr.bf16.mxu0 0
      %369 = vmatpush1.bf16.msra.mxu0 0
      %370 = vmatprep.mubr.bf16.mxu0 0
      %371 = vmatmul.mubr.bf16.gmra.mrb[0].mxu0 %v266
      %v372 = vpop.f32.mrb[0].mxu0
      %v373 = vadd.f32 %v288, %v372
      %v374 = vpop.f32.mrb[0].mxu0
      %v375 = vpop.f32.mrb[0].mxu0
      %v376 = vpop.f32.mrb[0].mxu0
      %377 = vdwg.mxu0
      %v378 = vld [vmem:[%s259] sm:$0xff]
      %v379 = vadd.f32 %v373, %v378
      %v380 = vld [vmem:[%s4] sm:$0x1]
      %v381 = vld [vmem:[%s5] sm:$0x1]
      %382 = vadd.xlane.f32.xlu0 %v379
      %v383 = vpop.xlane.xlu0 %382
      %v384 = vrcp.pop 128.0
      %v385 = vmul.f32 %v383, %v384
      %v386 = vsub.f32 %v379, %v385
      %v387 = vmul.f32 %v386, %v386
      %388 = vadd.xlane.f32.xlu0 %v387
      %v389 = vpop.xlane.xlu0 %388
      %v390 = vmul.f32 %v389, %v384
      %v391 = vadd.f32 %v390, 1e-12
      %v392 = vrsqrt.pop %v391
      %v393 = vmul.f32 %v386, %v392
      %v395 = vlaneseq
      %v396 = vshrl.u32 %v395, 7
      %v397 = vsub.s32 0, %v396
      %v398 = vrot.slane %v380, %v397
      %v400 = vmul.f32 %v393, %v398
      %v402 = vlaneseq
      %v403 = vshrl.u32 %v402, 7
      %v404 = vsub.s32 0, %v403
      %v405 = vrot.slane %v381, %v404
      %v407 = vadd.f32 %v400, %v405
      %408 = vst [vmem:[%s263] sm:$0xff] %v407
      %p409 = scmp.lt.s32.totalorder %s17, 1
      %s410 = scalar_select %p409, %s17, 1
      %s411 = smul.addr %s410, 8
      %s412 = scalar_lea.vmem %s6, %s411
      // Predicated region
      $region45: #{bert_encoder.12} parent=43 // pred_check
        %p413 = pneg %p171
      $region46: #{bert_encoder.12} parent=43 // pred_check_branch
        %415 = sbr.rel (%p413) target = $region48
      $region47: #{bert_encoder.12} parent=43 // pred_region
        _
      $region48: #{bert_encoder.12} parent=43 // pred_fallthru
        _
    $region44: #{bert_encoder.12} parent=5 // pred_fallthru
      _
    %p416 = scmp.le.s32.totalorder 2, %s12
    // Predicated region
    $region49: #{bert_encoder.12} parent=5 // pred_check
      %p417 = pneg %p416
    $region50: #{bert_encoder.12} parent=5 // pred_check_branch
      %419 = sbr.rel (%p417) target = $region52
    $region51: #{bert_encoder.12} parent=5 // pred_region
      %s420 = ssub.s32 %s12, 2
      // Predicated region
      $region53: #{bert_encoder.12} parent=51 // pred_check
        %p421 = pneg %p177
      $region54: #{bert_encoder.12} parent=51 // pred_check_branch
        %423 = sbr.rel (%p421) target = $region56
      $region55: #{bert_encoder.12} parent=51 // pred_region
        %p424 = scmp.lt.s32.totalorder %s18, 1
        %s425 = scalar_select %p424, %s18, 1
        %s426 = smul.addr %s425, 8
        %s427 = scalar_lea.vmem %s6, %s426
      $region56: #{bert_encoder.12} parent=51 // pred_fallthru
        _
    $region52: #{bert_encoder.12} parent=5 // pred_fallthru
      _
  $region6: #{bert_encoder.12} parent=0 // loop_footer
    %s16 = sadd.s32 1, %s12
  $region7: #{bert_encoder.12} parent=0 // loop_footer_branch
    %11 = sbr.rel target = $region3
  $region8: #{bert_encoder.12} parent=0 // loop_exit
    _

// kernel: bert_encoder.11
$region0: #{bert_encoder.11}
  #allocation0 [shape = 'u32[]', space=smem, size = 0x4, offset = 0x4, fixed_abs, tag = 'smem constant byte address 0x4 - core index']
  #allocation1 [shape = 'u32[144,128]{1,0:T(1,128)}', space=vmem, size = 0x12000, scoped, tag = 'internal scratch']
  %s0 = inlined_call_operand.vmem [shape: f32[4,8,64], index: 0, kind: input, shape index: {}]
  %s1 = inlined_call_operand.vmem [shape: f32[4,8,64], index: 1, kind: input, shape index: {}]
  %s2 = inlined_call_operand.vmem [shape: f32[4,8,64], index: 2, kind: input, shape index: {}]
  %s3 = inlined_call_operand.vmem [shape: f32[4,1,8], index: 3, kind: input, shape index: {}]
  %s4 = inlined_call_operand.vmem [shape: f32[4,8,64], index: 4, kind: output, shape index: {}]
  %s5 = sld [smem:[#allocation0]]
  $region49: #{bert_encoder.11} parent=0
    _
  %s7 = ssub.s32 1, %s5
  %s8 = scalar_select 0, %s7, %s5
  loop: start=0, step=1, limit=6
  $region2: #{bert_encoder.11} parent=0 // loop_pre_header
    _
  $region3: #{bert_encoder.11} parent=0 // loop_header
    %s10 = sphi 0, %s14
    %p11 = scmp.ge.s32.totalorder %s10, 6
    %s20 = sphi 0, %s22
    %s23 = sphi 0, %s20
    %s24 = sphi 0, %s23
    %s40 = sphi 0, %s24
    %s46 = sphi 0, %s48
    %s49 = sphi 0, %s46
    %s50 = sphi 0, %s49
    %s66 = sphi 0, %s50
    %s72 = sphi 0, %s74
    %s75 = sphi 0, %s72
    %s76 = sphi 0, %s75
    %s92 = sphi 0, %s76
    %s98 = sphi 0, %s100
    %s101 = sphi 0, %s98
    %s102 = sphi 0, %s101
    %s118 = sphi 0, %s102
    %s124 = sphi 0, %s126
    %s127 = sphi 0, %s124
    %s128 = sphi 0, %s127
    %s144 = sphi 0, %s128
  $region4: #{bert_encoder.11} parent=0 // loop_header_branch
    %13 = sbr.rel (%p11) target = $region8
  $region5: #{bert_encoder.11} parent=0 // loop_body
    %s15 = ssub.s32 %s10, 1
    %s16 = ssub.s32 %s10, 2
    %s17 = sadd.s32 %s10, 1
    %s18 = ssub.s32 %s10, %s17
    %p19 = scmp.eq.s32.totalorder %s18, 0
    %s21 = sadd.s32 %s20, 1
    %s22 = scalar_select %p19, %s20, %s21
    %p25 = pneg %p19
    %p26 = scmp.eq.s32.totalorder %s10, 3
    %p27 = por %p25, %p26
    %p28 = scmp.ne.s32.totalorder %s20, %s23
    %p29 = scmp.eq.s32.totalorder %s10, 0
    %p30 = por %p28, %p29
    %p31 = scmp.ne.s32.totalorder %s20, %s23
    %p32 = scmp.eq.s32.totalorder %s15, 3
    %p33 = por %p31, %p32
    %p34 = scmp.ne.s32.totalorder %s23, %s24
    %p35 = scmp.eq.s32.totalorder %s15, 0
    %p36 = por %p34, %p35
    %p37 = scmp.ne.s32.totalorder %s23, %s24
    %p38 = scmp.eq.s32.totalorder %s16, 3
    %p39 = por %p37, %p38
    %p41 = scmp.ne.s32.totalorder %s24, %s40
    %p42 = scmp.eq.s32.totalorder %s16, 0
    %p43 = por %p41, %p42
    %s44 = ssub.s32 %s10, %s17
    %p45 = scmp.eq.s32.totalorder %s44, 0
    %s47 = sadd.s32 %s46, 1
    %s48 = scalar_select %p45, %s46, %s47
    %p51 = pneg %p45
    %p52 = scmp.eq.s32.totalorder %s10, 3
    %p53 = por %p51, %p52
    %p54 = scmp.ne.s32.totalorder %s46, %s49
    %p55 = scmp.eq.s32.totalorder %s10, 0
    %p56 = por %p54, %p55
    %p57 = scmp.ne.s32.totalorder %s46, %s49
    %p58 = scmp.eq.s32.totalorder %s15, 3
    %p59 = por %p57, %p58
    %p60 = scmp.ne.s32.totalorder %s49, %s50
    %p61 = scmp.eq.s32.totalorder %s15, 0
    %p62 = por %p60, %p61
    %p63 = scmp.ne.s32.totalorder %s49, %s50
    %p64 = scmp.eq.s32.totalorder %s16, 3
    %p65 = por %p63, %p64
    %p67 = scmp.ne.s32.totalorder %s50, %s66
    %p68 = scmp.eq.s32.totalorder %s16, 0
    %p69 = por %p67, %p68
    %s70 = ssub.s32 %s10, %s17
    %p71 = scmp.eq.s32.totalorder %s70, 0
    %s73 = sadd.s32 %s72, 1
    %s74 = scalar_select %p71, %s72, %s73
    %p77 = pneg %p71
    %p78 = scmp.eq.s32.totalorder %s10, 3
    %p79 = por %p77, %p78
    %p80 = scmp.ne.s32.totalorder %s72, %s75
    %p81 = scmp.eq.s32.totalorder %s10, 0
    %p82 = por %p80, %p81
    %p83 = scmp.ne.s32.totalorder %s72, %s75
    %p84 = scmp.eq.s32.totalorder %s15, 3
    %p85 = por %p83, %p84
    %p86 = scmp.ne.s32.totalorder %s75, %s76
    %p87 = scmp.eq.s32.totalorder %s15, 0
    %p88 = por %p86, %p87
    %p89 = scmp.ne.s32.totalorder %s75, %s76
    %p90 = scmp.eq.s32.totalorder %s16, 3
    %p91 = por %p89, %p90
    %p93 = scmp.ne.s32.totalorder %s76, %s92
    %p94 = scmp.eq.s32.totalorder %s16, 0
    %p95 = por %p93, %p94
    %s96 = ssub.s32 %s10, %s17
    %p97 = scmp.eq.s32.totalorder %s96, 0
    %s99 = sadd.s32 %s98, 1
    %s100 = scalar_select %p97, %s98, %s99
    %p103 = pneg %p97
    %p104 = scmp.eq.s32.totalorder %s10, 3
    %p105 = por %p103, %p104
    %p106 = scmp.ne.s32.totalorder %s98, %s101
    %p107 = scmp.eq.s32.totalorder %s10, 0
    %p108 = por %p106, %p107
    %p109 = scmp.ne.s32.totalorder %s98, %s101
    %p110 = scmp.eq.s32.totalorder %s15, 3
    %p111 = por %p109, %p110
    %p112 = scmp.ne.s32.totalorder %s101, %s102
    %p113 = scmp.eq.s32.totalorder %s15, 0
    %p114 = por %p112, %p113
    %p115 = scmp.ne.s32.totalorder %s101, %s102
    %p116 = scmp.eq.s32.totalorder %s16, 3
    %p117 = por %p115, %p116
    %p119 = scmp.ne.s32.totalorder %s102, %s118
    %p120 = scmp.eq.s32.totalorder %s16, 0
    %p121 = por %p119, %p120
    %s122 = ssub.s32 %s10, %s17
    %p123 = scmp.eq.s32.totalorder %s122, 0
    %s125 = sadd.s32 %s124, 1
    %s126 = scalar_select %p123, %s124, %s125
    %p129 = pneg %p123
    %p130 = scmp.eq.s32.totalorder %s10, 3
    %p131 = por %p129, %p130
    %p132 = scmp.ne.s32.totalorder %s124, %s127
    %p133 = scmp.eq.s32.totalorder %s10, 0
    %p134 = por %p132, %p133
    %p135 = scmp.ne.s32.totalorder %s124, %s127
    %p136 = scmp.eq.s32.totalorder %s15, 3
    %p137 = por %p135, %p136
    %p138 = scmp.ne.s32.totalorder %s127, %s128
    %p139 = scmp.eq.s32.totalorder %s15, 0
    %p140 = por %p138, %p139
    %p141 = scmp.ne.s32.totalorder %s127, %s128
    %p142 = scmp.eq.s32.totalorder %s16, 3
    %p143 = por %p141, %p142
    %p145 = scmp.ne.s32.totalorder %s128, %s144
    %p146 = scmp.eq.s32.totalorder %s16, 0
    %p147 = por %p145, %p146
    %p148 = scmp.le.s32.totalorder 1, %s10
    %p149 = scmp.lt.s32.totalorder %s10, 5
    %p150 = pnand %p148, %p149
    %p151 = pneg %p150
    // Predicated region
    $region9: #{bert_encoder.11} parent=5 // pred_check
      _
    $region10: #{bert_encoder.11} parent=5 // pred_check_branch
      %153 = sbr.rel (%p150) target = $region12
    $region11: #{bert_encoder.11} parent=5 // pred_region
      %s154 = ssub.s32 %s10, 1
    $region12: #{bert_encoder.11} parent=5 // pred_fallthru
      _
    %p155 = scmp.lt.s32.totalorder %s10, 4
    // Predicated region
    $region13: #{bert_encoder.11} parent=5 // pred_check
      %p156 = pneg %p155
    $region14: #{bert_encoder.11} parent=5 // pred_check_branch
      %158 = sbr.rel (%p156) target = $region16
    $region15: #{bert_encoder.11} parent=5 // pred_region
      // Predicated region
      $region17: #{bert_encoder.11} parent=15 // pred_check
        %p159 = pneg %p30
      $region18: #{bert_encoder.11} parent=15 // pred_check_branch
        %161 = sbr.rel (%p159) target = $region20
      $region19: #{bert_encoder.11} parent=15 // pred_region
        %p162 = scmp.lt.s32.totalorder %s10, 3
        %s163 = scalar_select %p162, %s10, 3
        %s164 = smul.addr %s163, 8
        %s165 = scalar_lea.vmem %s0, %s164
      $region20: #{bert_encoder.11} parent=15 // pred_fallthru
        _
      // Predicated region
      $region21: #{bert_encoder.11} parent=15 // pred_check
        %p166 = pneg %p56
      $region22: #{bert_encoder.11} parent=15 // pred_check_branch
        %168 = sbr.rel (%p166) target = $region24
      $region23: #{bert_encoder.11} parent=15 // pred_region
        %p169 = scmp.lt.s32.totalorder %s10, 3
        %s170 = scalar_select %p169, %s10, 3
        %s171 = smul.addr %s170, 8
        %s172 = scalar_lea.vmem %s1, %s171
      $region24: #{bert_encoder.11} parent=15 // pred_fallthru
        _
      // Predicated region
      $region25: #{bert_encoder.11} parent=15 // pred_check
        %p173 = pneg %p82
      $region26: #{bert_encoder.11} parent=15 // pred_check_branch
        %175 = sbr.rel (%p173) target = $region28
      $region27: #{bert_encoder.11} parent=15 // pred_region
        %p176 = scmp.lt.s32.totalorder %s10, 3
        %s177 = scalar_select %p176, %s10, 3
        %s178 = smul.addr %s177, 8
        %s179 = scalar_lea.vmem %s2, %s178
      $region28: #{bert_encoder.11} parent=15 // pred_fallthru
        _
      // Predicated region
      $region29: #{bert_encoder.11} parent=15 // pred_check
        %p180 = pneg %p108
      $region30: #{bert_encoder.11} parent=15 // pred_check_branch
        %182 = sbr.rel (%p180) target = $region32
      $region31: #{bert_encoder.11} parent=15 // pred_region
        %p183 = scmp.lt.s32.totalorder %s10, 3
        %s184 = scalar_select %p183, %s10, 3
        %s185 = scalar_lea.vmem %s3, %s184
      $region32: #{bert_encoder.11} parent=15 // pred_fallthru
        _
    $region16: #{bert_encoder.11} parent=5 // pred_fallthru
      _
    %p186 = scmp.le.s32.totalorder 1, %s10
    %p187 = scmp.lt.s32.totalorder %s10, 5
    %p188 = pnand %p186, %p187
    %p189 = pneg %p188
    // Predicated region
    $region33: #{bert_encoder.11} parent=5 // pred_check
      _
    $region34: #{bert_encoder.11} parent=5 // pred_check_branch
      %191 = sbr.rel (%p188) target = $region36
    $region35: #{bert_encoder.11} parent=5 // pred_region
      %s192 = ssub.s32 %s10, 1
      %p193 = scmp.lt.s32.totalorder %s15, 3
      %s194 = scalar_select %p193, %s15, 3
      %s195 = smul.addr %s194, 8
      %s196 = scalar_lea.vmem %s0, %s195
      %p197 = pneg %p36
      %p198 = pneg %p33
      %p199 = scmp.lt.s32.totalorder %s15, 3
      %s200 = scalar_select %p199, %s15, 3
      %s201 = smul.addr %s200, 8
      %s202 = scalar_lea.vmem %s1, %s201
      %p203 = pneg %p62
      %p204 = pneg %p59
      %p205 = scmp.lt.s32.totalorder %s15, 3
      %s206 = scalar_select %p205, %s15, 3
      %s207 = smul.addr %s206, 8
      %s208 = scalar_lea.vmem %s2, %s207
      %p209 = pneg %p88
      %p210 = pneg %p85
      %p211 = scmp.lt.s32.totalorder %s15, 3
      %s212 = scalar_select %p211, %s15, 3
      %s213 = scalar_lea.vmem %s3, %s212
      %p214 = pneg %p114
      %p215 = pneg %p111
      %p216 = pneg %p140
      %p217 = pneg %p137
      %p218 = scmp.lt.s32.totalorder %s15, 3
      %s219 = scalar_select %p218, %s15, 3
      %s220 = smul.addr %s219, 8
      %s221 = scalar_lea.vmem %s4, %s220
      %p222 = scmp.lt.s32.totalorder %s15, 3
      %s223 = scalar_select %p222, %s15, 3
      %s224 = smul.addr %s223, 8
      %s225 = scalar_lea.vmem %s0, %s224
      %p226 = scmp.lt.s32.totalorder %s15, 3
      %s227 = scalar_select %p226, %s15, 3
      %s228 = smul.addr %s227, 8
      %s229 = scalar_lea.vmem %s1, %s228
      %p230 = scmp.lt.s32.totalorder %s15, 3
      %s231 = scalar_select %p230, %s15, 3
      %s232 = smul.addr %s231, 8
      %s233 = scalar_lea.vmem %s2, %s232
      %p234 = scmp.lt.s32.totalorder %s15, 3
      %s235 = scalar_select %p234, %s15, 3
      %s236 = scalar_lea.vmem %s3, %s235
      %p237 = scmp.lt.s32.totalorder %s15, 3
      %s238 = scalar_select %p237, %s15, 3
      %s239 = smul.addr %s238, 8
      %s240 = scalar_lea.vmem %s4, %s239
      %v242 = vld [vmem:[%s225] sm:$0xff]
      %v243 = vpack.c.bf16 %v242, %v242
      %v244 = vld [vmem:[%s229] sm:$0xff]
      %v245 = vpack.c.bf16 %v244, %v244
      %v246 = vld [vmem:[%s233] sm:$0xff]
      %v247 = vpack.c.bf16 %v246, %v246
      %vm248 = vcmask 523264
      %v250 = vsel %vm248, %v243, 0
      %v253 = vsel %vm248, %v245, 0
      %255 = vmatprep.subr.bf16.mxu0 0
      %256 = vmatpush1.bf16.xpose.msra.mxu0 %v253
      %257 = vmatprep.subr.bf16.mxu0 0
      %258 = vmatpush1.bf16.xpose.msra.mxu0 0
      %259 = vmatprep.subr.bf16.mxu0 0
      %260 = vmatpush1.bf16.xpose.msra.mxu0 0
      %261 = vmatprep.subr.bf16.mxu0 0
      %262 = vmatpush1.bf16.xpose.msra.mxu0 0
      %263 = vmatprep.subr.bf16.mxu0 0
      %264 = vmatpush1.bf16.xpose.msra.mxu0 0
      %265 = vmatprep.subr.bf16.mxu0 0
      %266 = vmatpush1.bf16.xpose.msra.mxu0 0
      %267 = vmatprep.subr.bf16.mxu0 0
      %268 = vmatpush1.bf16.xpose.msra.mxu0 0
      %269 = vmatprep.subr.bf16.mxu0 0
      %270 = vmatpush1.bf16.xpose.msra.mxu0 0
      %271 = vmatprep.subr.bf16.mxu0 0
      %272 = vmatpush1.bf16.xpose.msra.mxu0 0
      %273 = vmatprep.subr.bf16.mxu0 0
      %274 = vmatpush1.bf16.xpose.msra.mxu0 0
      %275 = vmatprep.subr.bf16.mxu0 0
      %276 = vmatpush1.bf16.xpose.msra.mxu0 0
      %277 = vmatprep.subr.bf16.mxu0 0
      %278 = vmatpush1.bf16.xpose.msra.mxu0 0
      %279 = vmatprep.subr.bf16.mxu0 0
      %280 = vmatpush1.bf16.xpose.msra.mxu0 0
      %281 = vmatprep.subr.bf16.mxu0 0
      %282 = vmatpush1.bf16.xpose.msra.mxu0 0
      %283 = vmatprep.subr.bf16.mxu0 0
      %284 = vmatpush1.bf16.xpose.msra.mxu0 0
      %285 = vmatprep.subr.bf16.mxu0 0
      %286 = vmatpush1.bf16.xpose.msra.mxu0 0
      %287 = vmatprep.mubr.bf16.mxu0 0
      %288 = vmatmul.mubr.bf16.gmra.mrb[0].mxu0 %v250
      %v289 = vpop.f32.mrb[0].mxu0
      %v290 = vadd.f32 0.0, %v289
      %v291 = vpop.f32.mrb[0].mxu0
      %v292 = vpop.f32.mrb[0].mxu0
      %v293 = vpop.f32.mrb[0].mxu0
      %294 = vdwg.mxu0
      %v295 = vmul.f32 %v290, 0.125
      %v296 = vld [vmem:[%s236] sm:$0x1]
      %v298 = vlaneseq
      %v299 = vshrl.u32 %v298, 7
      %v300 = vsub.s32 0, %v299
      %v301 = vrot.slane %v296, %v300
      %v303 = vadd.f32 %v295, %v301
      %vm304 = vcmask 64512
      %v305 = vsel %vm304, %v303, -inf
      %306 = vmax.xlane.f32.xlu0 %v305
      %v307 = vpop.xlane.xlu0 %306
      %v308 = vsub.f32 %v303, %v307
      %v309 = vmul.f32 %v308, 1.442695
      %v310 = vpow.pop %v309
      %v311 = vsel %vm304, %v310, 0.0
      %312 = vadd.xlane.f32.xlu0 %v311
      %v313 = vpop.xlane.xlu0 %312
      %v314 = vrcp.pop %v313
      %v315 = vmul.f32 %v310, %v314
      %v316 = vpack.c.bf16 %v315, %v315
      %v318 = vsel %vm304, %v316, 0
      %vm320 = vcmask 1043456
      %v322 = vsel %vm320, %v247, 0
      %324 = vmatprep.subr.bf16.mxu0 0
      %325 = vmatpush1.bf16.msra.mxu0 %v322
      %326 = vmatprep.subr.bf16.mxu0 0
      %327 = vmatpush1.bf16.msra.mxu0 0
      %328 = vmatprep.subr.bf16.mxu0 0
      %329 = vmatpush1.bf16.msra.mxu0 0
      %330 = vmatprep.subr.bf16.mxu0 0
      %331 = vmatpush1.bf16.msra.mxu0 0
      %332 = vmatprep.subr.bf16.mxu0 0
      %333 = vmatpush1.bf16.msra.mxu0 0
      %334 = vmatprep.subr.bf16.mxu0 0
      %335 = vmatpush1.bf16.msra.mxu0 0
      %336 = vmatprep.subr.bf16.mxu0 0
      %337 = vmatpush1.bf16.msra.mxu0 0
      %338 = vmatprep.subr.bf16.mxu0 0
      %339 = vmatpush1.bf16.msra.mxu0 0
      %340 = vmatprep.subr.bf16.mxu0 0
      %341 = vmatpush1.bf16.msra.mxu0 0
      %342 = vmatprep.subr.bf16.mxu0 0
      %343 = vmatpush1.bf16.msra.mxu0 0
      %344 = vmatprep.subr.bf16.mxu0 0
      %345 = vmatpush1.bf16.msra.mxu0 0
      %346 = vmatprep.subr.bf16.mxu0 0
      %347 = vmatpush1.bf16.msra.mxu0 0
      %348 = vmatprep.subr.bf16.mxu0 0
      %349 = vmatpush1.bf16.msra.mxu0 0
      %350 = vmatprep.subr.bf16.mxu0 0
      %351 = vmatpush1.bf16.msra.mxu0 0
      %352 = vmatprep.subr.bf16.mxu0 0
      %353 = vmatpush1.bf16.msra.mxu0 0
      %354 = vmatprep.subr.bf16.mxu0 0
      %355 = vmatpush1.bf16.msra.mxu0 0
      %356 = vmatprep.mubr.bf16.mxu0 0
      %357 = vmatmul.mubr.bf16.gmra.mrb[0].mxu0 %v318
      %v358 = vpop.f32.mrb[0].mxu0
      %v359 = vadd.f32 0.0, %v358
      %v360 = vpop.f32.mrb[0].mxu0
      %v361 = vpop.f32.mrb[0].mxu0
      %v362 = vpop.f32.mrb[0].mxu0
      %363 = vdwg.mxu0
      %364 = vst.msk [vmem:[%s240] sm:$0xff] %vm248, %v359
      %p365 = scmp.lt.s32.totalorder %s15, 3
      %s366 = scalar_select %p365, %s15, 3
      %s367 = smul.addr %s366, 8
      %s368 = scalar_lea.vmem %s4, %s367
      // Predicated region
      $region37: #{bert_encoder.11} parent=35 // pred_check
        %p369 = pneg %p137
      $region38: #{bert_encoder.11} parent=35 // pred_check_branch
        %371 = sbr.rel (%p369) target = $region40
      $region39: #{bert_encoder.11} parent=35 // pred_region
        _
      $region40: #{bert_encoder.11} parent=35 // pred_fallthru
        _
    $region36: #{bert_encoder.11} parent=5 // pred_fallthru
      _
    %p372 = scmp.le.s32.totalorder 2, %s10
    // Predicated region
    $region41: #{bert_encoder.11} parent=5 // pred_check
      %p373 = pneg %p372
    $region42: #{bert_encoder.11} parent=5 // pred_check_branch
      %375 = sbr.rel (%p373) target = $region44
    $region43: #{bert_encoder.11} parent=5 // pred_region
      %s376 = ssub.s32 %s10, 2
      // Predicated region
      $region45: #{bert_encoder.11} parent=43 // pred_check
        %p377 = pneg %p143
      $region46: #{bert_encoder.11} parent=43 // pred_check_branch
        %379 = sbr.rel (%p377) target = $region48
      $region47: #{bert_encoder.11} parent=43 // pred_region
        %p380 = scmp.lt.s32.totalorder %s16, 3
        %s381 = scalar_select %p380, %s16, 3
        %s382 = smul.addr %s381, 8
        %s383 = scalar_lea.vmem %s4, %s382
      $region48: #{bert_encoder.11} parent=43 // pred_fallthru
        _
    $region44: #{bert_encoder.11} parent=5 // pred_fallthru
      _
  $region6: #{bert_encoder.11} parent=0 // loop_footer
    %s14 = sadd.s32 1, %s10
  $region7: #{bert_encoder.11} parent=0 // loop_footer_branch
    %9 = sbr.rel target = $region3
  $region8: #{bert_encoder.11} parent=0 // loop_exit
    _

// kernel: bert_encoder.13
$region0: #{bert_encoder.13}
  #allocation0 [shape = 'u32[]', space=smem, size = 0x4, offset = 0x4, fixed_abs, tag = 'smem constant byte address 0x4 - core index']
  #allocation1 [shape = 'u32[144,128]{1,0:T(1,128)}', space=vmem, size = 0x12000, scoped, tag = 'internal scratch']
  %s0 = inlined_call_operand.vmem [shape: f32[16,128], index: 0, kind: input, shape index: {}, may-alias: {0,7}]
  %s1 = inlined_call_operand.vmem [shape: bf16[128,512], index: 1, kind: input, shape index: {}]
  %s2 = inlined_call_operand.vmem [shape: f32[1,512], index: 2, kind: input, shape index: {}]
  %s3 = inlined_call_operand.vmem [shape: bf16[512,128], index: 3, kind: input, shape index: {}]
  %s4 = inlined_call_operand.vmem [shape: f32[1,128], index: 4, kind: input, shape index: {}]
  %s5 = inlined_call_operand.vmem [shape: f32[1,128], index: 5, kind: input, shape index: {}]
  %s6 = inlined_call_operand.vmem [shape: f32[1,128], index: 6, kind: input, shape index: {}]
  %s7 = inlined_call_operand.vmem [shape: f32[16,128], index: 7, kind: output, shape index: {}, may-alias: {0,7}]
  %s8 = sld [smem:[#allocation0]]
  $region61: #{bert_encoder.13} parent=0
    _
  %s10 = ssub.s32 1, %s8
  %s11 = scalar_select 0, %s10, %s8
  loop: start=0, step=1, limit=4
  $region2: #{bert_encoder.13} parent=0 // loop_pre_header
    _
  $region3: #{bert_encoder.13} parent=0 // loop_header
    %s13 = sphi 0, %s17
    %p14 = scmp.ge.s32.totalorder %s13, 4
    %s23 = sphi 0, %s25
    %s26 = sphi 0, %s23
    %s27 = sphi 0, %s26
    %s43 = sphi 0, %s27
    %s47 = sphi 0, %s47
    %s49 = sphi 0, %s47
    %s50 = sphi 0, %s49
    %s64 = sphi 0, %s50
    %s68 = sphi 0, %s68
    %s70 = sphi 0, %s68
    %s71 = sphi 0, %s70
    %s85 = sphi 0, %s71
    %s89 = sphi 0, %s89
    %s91 = sphi 0, %s89
    %s92 = sphi 0, %s91
    %s106 = sphi 0, %s92
    %s110 = sphi 0, %s110
    %s112 = sphi 0, %s110
    %s113 = sphi 0, %s112
    %s127 = sphi 0, %s113
    %s131 = sphi 0, %s131
    %s133 = sphi 0, %s131
    %s134 = sphi 0, %s133
    %s148 = sphi 0, %s134
    %s152 = sphi 0, %s152
    %s154 = sphi 0, %s152
    %s155 = sphi 0, %s154
    %s169 = sphi 0, %s155
    %s175 = sphi 0, %s177
    %s178 = sphi 0, %s175
    %s179 = sphi 0, %s178
    %s195 = sphi 0, %s179
  $region4: #{bert_encoder.13} parent=0 // loop_header_branch
    %16 = sbr.rel (%p14) target = $region8
  $region5: #{bert_encoder.13} parent=0 // loop_body
    %s18 = ssub.s32 %s13, 1
    %s19 = ssub.s32 %s13, 2
    %s20 = sadd.s32 %s13, 1
    %s21 = ssub.s32 %s13, %s20
    %p22 = scmp.eq.s32.totalorder %s21, 0
    %s24 = sadd.s32 %s23, 1
    %s25 = scalar_select %p22, %s23, %s24
    %p28 = pneg %p22
    %p29 = scmp.eq.s32.totalorder %s13, 1
    %p30 = por %p28, %p29
    %p31 = scmp.ne.s32.totalorder %s23, %s26
    %p32 = scmp.eq.s32.totalorder %s13, 0
    %p33 = por %p31, %p32
    %p34 = scmp.ne.s32.totalorder %s23, %s26
    %p35 = scmp.eq.s32.totalorder %s18, 1
    %p36 = por %p34, %p35
    %p37 = scmp.ne.s32.totalorder %s26, %s27
    %p38 = scmp.eq.s32.totalorder %s18, 0
    %p39 = por %p37, %p38
    %p40 = scmp.ne.s32.totalorder %s26, %s27
    %p41 = scmp.eq.s32.totalorder %s19, 1
    %p42 = por %p40, %p41
    %p44 = scmp.ne.s32.totalorder %s27, %s43
    %p45 = scmp.eq.s32.totalorder %s19, 0
    %p46 = por %p44, %p45
    %s48 = sadd.s32 %s47, 1
    %p51 = scmp.eq.s32.totalorder %s13, 1
    %p52 = scmp.ne.s32.totalorder %s47, %s49
    %p53 = scmp.eq.s32.totalorder %s13, 0
    %p54 = por %p52, %p53
    %p55 = scmp.ne.s32.totalorder %s47, %s49
    %p56 = scmp.eq.s32.totalorder %s18, 1
    %p57 = por %p55, %p56
    %p58 = scmp.ne.s32.totalorder %s49, %s50
    %p59 = scmp.eq.s32.totalorder %s18, 0
    %p60 = por %p58, %p59
    %p61 = scmp.ne.s32.totalorder %s49, %s50
    %p62 = scmp.eq.s32.totalorder %s19, 1
    %p63 = por %p61, %p62
    %p65 = scmp.ne.s32.totalorder %s50, %s64
    %p66 = scmp.eq.s32.totalorder %s19, 0
    %p67 = por %p65, %p66
    %s69 = sadd.s32 %s68, 1
    %p72 = scmp.eq.s32.totalorder %s13, 1
    %p73 = scmp.ne.s32.totalorder %s68, %s70
    %p74 = scmp.eq.s32.totalorder %s13, 0
    %p75 = por %p73, %p74
    %p76 = scmp.ne.s32.totalorder %s68, %s70
    %p77 = scmp.eq.s32.totalorder %s18, 1
    %p78 = por %p76, %p77
    %p79 = scmp.ne.s32.totalorder %s70, %s71
    %p80 = scmp.eq.s32.totalorder %s18, 0
    %p81 = por %p79, %p80
    %p82 = scmp.ne.s32.totalorder %s70, %s71
    %p83 = scmp.eq.s32.totalorder %s19, 1
    %p84 = por %p82, %p83
    %p86 = scmp.ne.s32.totalorder %s71, %s85
    %p87 = scmp.eq.s32.totalorder %s19, 0
    %p88 = por %p86, %p87
    %s90 = sadd.s32 %s89, 1
    %p93 = scmp.eq.s32.totalorder %s13, 1
    %p94 = scmp.ne.s32.totalorder %s89, %s91
    %p95 = scmp.eq.s32.totalorder %s13, 0
    %p96 = por %p94, %p95
    %p97 = scmp.ne.s32.totalorder %s89, %s91
    %p98 = scmp.eq.s32.totalorder %s18, 1
    %p99 = por %p97, %p98
    %p100 = scmp.ne.s32.totalorder %s91, %s92
    %p101 = scmp.eq.s32.totalorder %s18, 0
    %p102 = por %p100, %p101
    %p103 = scmp.ne.s32.totalorder %s91, %s92
    %p104 = scmp.eq.s32.totalorder %s19, 1
    %p105 = por %p103, %p104
    %p107 = scmp.ne.s32.totalorder %s92, %s106
    %p108 = scmp.eq.s32.totalorder %s19, 0
    %p109 = por %p107, %p108
    %s111 = sadd.s32 %s110, 1
    %p114 = scmp.eq.s32.totalorder %s13, 1
    %p115 = scmp.ne.s32.totalorder %s110, %s112
    %p116 = scmp.eq.s32.totalorder %s13, 0
    %p117 = por %p115, %p116
    %p118 = scmp.ne.s32.totalorder %s110, %s112
    %p119 = scmp.eq.s32.totalorder %s18, 1
    %p120 = por %p118, %p119
    %p121 = scmp.ne.s32.totalorder %s112, %s113
    %p122 = scmp.eq.s32.totalorder %s18, 0
    %p123 = por %p121, %p122
    %p124 = scmp.ne.s32.totalorder %s112, %s113
    %p125 = scmp.eq.s32.totalorder %s19, 1
    %p126 = por %p124, %p125
    %p128 = scmp.ne.s32.totalorder %s113, %s127
    %p129 = scmp.eq.s32.totalorder %s19, 0
    %p130 = por %p128, %p129
    %s132 = sadd.s32 %s131, 1
    %p135 = scmp.eq.s32.totalorder %s13, 1
    %p136 = scmp.ne.s32.totalorder %s131, %s133
    %p137 = scmp.eq.s32.totalorder %s13, 0
    %p138 = por %p136, %p137
    %p139 = scmp.ne.s32.totalorder %s131, %s133
    %p140 = scmp.eq.s32.totalorder %s18, 1
    %p141 = por %p139, %p140
    %p142 = scmp.ne.s32.totalorder %s133, %s134
    %p143 = scmp.eq.s32.totalorder %s18, 0
    %p144 = por %p142, %p143
    %p145 = scmp.ne.s32.totalorder %s133, %s134
    %p146 = scmp.eq.s32.totalorder %s19, 1
    %p147 = por %p145, %p146
    %p149 = scmp.ne.s32.totalorder %s134, %s148
    %p150 = scmp.eq.s32.totalorder %s19, 0
    %p151 = por %p149, %p150
    %s153 = sadd.s32 %s152, 1
    %p156 = scmp.eq.s32.totalorder %s13, 1
    %p157 = scmp.ne.s32.totalorder %s152, %s154
    %p158 = scmp.eq.s32.totalorder %s13, 0
    %p159 = por %p157, %p158
    %p160 = scmp.ne.s32.totalorder %s152, %s154
    %p161 = scmp.eq.s32.totalorder %s18, 1
    %p162 = por %p160, %p161
    %p163 = scmp.ne.s32.totalorder %s154, %s155
    %p164 = scmp.eq.s32.totalorder %s18, 0
    %p165 = por %p163, %p164
    %p166 = scmp.ne.s32.totalorder %s154, %s155
    %p167 = scmp.eq.s32.totalorder %s19, 1
    %p168 = por %p166, %p167
    %p170 = scmp.ne.s32.totalorder %s155, %s169
    %p171 = scmp.eq.s32.totalorder %s19, 0
    %p172 = por %p170, %p171
    %s173 = ssub.s32 %s13, %s20
    %p174 = scmp.eq.s32.totalorder %s173, 0
    %s176 = sadd.s32 %s175, 1
    %s177 = scalar_select %p174, %s175, %s176
    %p180 = pneg %p174
    %p181 = scmp.eq.s32.totalorder %s13, 1
    %p182 = por %p180, %p181
    %p183 = scmp.ne.s32.totalorder %s175, %s178
    %p184 = scmp.eq.s32.totalorder %s13, 0
    %p185 = por %p183, %p184
    %p186 = scmp.ne.s32.totalorder %s175, %s178
    %p187 = scmp.eq.s32.totalorder %s18, 1
    %p188 = por %p186, %p187
    %p189 = scmp.ne.s32.totalorder %s178, %s179
    %p190 = scmp.eq.s32.totalorder %s18, 0
    %p191 = por %p189, %p190
    %p192 = scmp.ne.s32.totalorder %s178, %s179
    %p193 = scmp.eq.s32.totalorder %s19, 1
    %p194 = por %p192, %p193
    %p196 = scmp.ne.s32.totalorder %s179, %s195
    %p197 = scmp.eq.s32.totalorder %s19, 0
    %p198 = por %p196, %p197
    %p199 = scmp.le.s32.totalorder 1, %s13
    %p200 = scmp.lt.s32.totalorder %s13, 3
    %p201 = pnand %p199, %p200
    %p202 = pneg %p201
    // Predicated region
    $region9: #{bert_encoder.13} parent=5 // pred_check
      _
    $region10: #{bert_encoder.13} parent=5 // pred_check_branch
      %204 = sbr.rel (%p201) target = $region12
    $region11: #{bert_encoder.13} parent=5 // pred_region
      %s205 = ssub.s32 %s13, 1
      // Predicated region
      $region13: #{bert_encoder.13} parent=11 // pred_check
        %p206 = pneg %p60
      $region14: #{bert_encoder.13} parent=11 // pred_check_branch
        %208 = sbr.rel (%p206) target = $region16
      $region15: #{bert_encoder.13} parent=11 // pred_region
        _
      $region16: #{bert_encoder.13} parent=11 // pred_fallthru
        _
      // Predicated region
      $region17: #{bert_encoder.13} parent=11 // pred_check
        %p209 = pneg %p81
      $region18: #{bert_encoder.13} parent=11 // pred_check_branch
        %211 = sbr.rel (%p209) target = $region20
      $region19: #{bert_encoder.13} parent=11 // pred_region
        _
      $region20: #{bert_encoder.13} parent=11 // pred_fallthru
        _
      // Predicated region
      $region21: #{bert_encoder.13} parent=11 // pred_check
        %p212 = pneg %p102
      $region22: #{bert_encoder.13} parent=11 // pred_check_branch
        %214 = sbr.rel (%p212) target = $region24
      $region23: #{bert_encoder.13} parent=11 // pred_region
        _
      $region24: #{bert_encoder.13} parent=11 // pred_fallthru
        _
      // Predicated region
      $region25: #{bert_encoder.13} parent=11 // pred_check
        %p215 = pneg %p123
      $region26: #{bert_encoder.13} parent=11 // pred_check_branch
        %217 = sbr.rel (%p215) target = $region28
      $region27: #{bert_encoder.13} parent=11 // pred_region
        _
      $region28: #{bert_encoder.13} parent=11 // pred_fallthru
        _
      // Predicated region
      $region29: #{bert_encoder.13} parent=11 // pred_check
        %p218 = pneg %p144
      $region30: #{bert_encoder.13} parent=11 // pred_check_branch
        %220 = sbr.rel (%p218) target = $region32
      $region31: #{bert_encoder.13} parent=11 // pred_region
        _
      $region32: #{bert_encoder.13} parent=11 // pred_fallthru
        _
      // Predicated region
      $region33: #{bert_encoder.13} parent=11 // pred_check
        %p221 = pneg %p165
      $region34: #{bert_encoder.13} parent=11 // pred_check_branch
        %223 = sbr.rel (%p221) target = $region36
      $region35: #{bert_encoder.13} parent=11 // pred_region
        _
      $region36: #{bert_encoder.13} parent=11 // pred_fallthru
        _
    $region12: #{bert_encoder.13} parent=5 // pred_fallthru
      _
    %p224 = scmp.lt.s32.totalorder %s13, 2
    // Predicated region
    $region37: #{bert_encoder.13} parent=5 // pred_check
      %p225 = pneg %p224
    $region38: #{bert_encoder.13} parent=5 // pred_check_branch
      %227 = sbr.rel (%p225) target = $region40
    $region39: #{bert_encoder.13} parent=5 // pred_region
      // Predicated region
      $region41: #{bert_encoder.13} parent=39 // pred_check
        %p228 = pneg %p33
      $region42: #{bert_encoder.13} parent=39 // pred_check_branch
        %230 = sbr.rel (%p228) target = $region44
      $region43: #{bert_encoder.13} parent=39 // pred_region
        %p231 = scmp.lt.s32.totalorder %s13, 1
        %s232 = scalar_select %p231, %s13, 1
        %s233 = smul.addr %s232, 8
        %s234 = scalar_lea.vmem %s0, %s233
      $region44: #{bert_encoder.13} parent=39 // pred_fallthru
        _
    $region40: #{bert_encoder.13} parent=5 // pred_fallthru
      _
    %p235 = scmp.le.s32.totalorder 1, %s13
    %p236 = scmp.lt.s32.totalorder %s13, 3
    %p237 = pnand %p235, %p236
    %p238 = pneg %p237
    // Predicated region
    $region45: #{bert_encoder.13} parent=5 // pred_check
      _
    $region46: #{bert_encoder.13} parent=5 // pred_check_branch
      %240 = sbr.rel (%p237) target = $region48
    $region47: #{bert_encoder.13} parent=5 // pred_region
      %s241 = ssub.s32 %s13, 1
      %p242 = scmp.lt.s32.totalorder %s18, 1
      %s243 = scalar_select %p242, %s18, 1
      %s244 = smul.addr %s243, 8
      %s245 = scalar_lea.vmem %s0, %s244
      %p246 = pneg %p39
      %p247 = pneg %p36
      %p248 = pneg %p60
      %p249 = pneg %p57
      %p250 = pneg %p81
      %p251 = pneg %p78
      %p252 = pneg %p102
      %p253 = pneg %p99
      %p254 = pneg %p123
      %p255 = pneg %p120
      %p256 = pneg %p144
      %p257 = pneg %p141
      %p258 = pneg %p165
      %p259 = pneg %p162
      %p260 = pneg %p191
      %p261 = pneg %p188
      %p262 = scmp.lt.s32.totalorder %s18, 1
      %s263 = scalar_select %p262, %s18, 1
      %s264 = smul.addr %s263, 8
      %s265 = scalar_lea.vmem %s7, %s264
      %p266 = scmp.lt.s32.totalorder %s18, 1
      %s267 = scalar_select %p266, %s18, 1
      %s268 = smul.addr %s267, 8
      %s269 = scalar_lea.vmem %s0, %s268
      %p270 = scmp.lt.s32.totalorder %s18, 1
      %s271 = scalar_select %p270, %s18, 1
      %s272 = smul.addr %s271, 8
      %s273 = scalar_lea.vmem %s7, %s272
      %v275 = vld [vmem:[%s269] sm:$0xff]
      %v276 = vpack.c.bf16 %v275, %v275
      %v277 = vld [vmem:[%s1] sm:$0xff]
      %v278 = vld [vmem:[%s1 + $0x8] sm:$0xff]
      %v279 = vld [vmem:[%s1 + $0x10] sm:$0xff]
      %v280 = vld [vmem:[%s1 + $0x18] sm:$0xff]
      %v281 = vld [vmem:[%s1 + $0x20] sm:$0xff]
      %v282 = vld [vmem:[%s1 + $0x28] sm:$0xff]
      %v283 = vld [vmem:[%s1 + $0x30] sm:$0xff]
      %v284 = vld [vmem:[%s1 + $0x38] sm:$0xff]
      %v285 = vld [vmem:[%s1 + $0x40] sm:$0xff]
      %v286 = vld [vmem:[%s1 + $0x48] sm:$0xff]
      %v287 = vld [vmem:[%s1 + $0x50] sm:$0xff]
      %v288 = vld [vmem:[%s1 + $0x58] sm:$0xff]
      %v289 = vld [vmem:[%s1 + $0x60] sm:$0xff]
      %v290 = vld [vmem:[%s1 + $0x68] sm:$0xff]
      %v291 = vld [vmem:[%s1 + $0x70] sm:$0xff]
      %v292 = vld [vmem:[%s1 + $0x78] sm:$0xff]
      %v293 = vld [vmem:[%s1 + $0x80] sm:$0xff]
      %v294 = vld [vmem:[%s1 + $0x88] sm:$0xff]
      %v295 = vld [vmem:[%s1 + $0x90] sm:$0xff]
      %v296 = vld [vmem:[%s1 + $0x98] sm:$0xff]
      %v297 = vld [vmem:[%s1 + $0xa0] sm:$0xff]
      %v298 = vld [vmem:[%s1 + $0xa8] sm:$0xff]
      %v299 = vld [vmem:[%s1 + $0xb0] sm:$0xff]
      %v300 = vld [vmem:[%s1 + $0xb8] sm:$0xff]
      %v301 = vld [vmem:[%s1 + $0xc0] sm:$0xff]
      %v302 = vld [vmem:[%s1 + $0xc8] sm:$0xff]
      %v303 = vld [vmem:[%s1 + $0xd0] sm:$0xff]
      %v304 = vld [vmem:[%s1 + $0xd8] sm:$0xff]
      %v305 = vld [vmem:[%s1 + $0xe0] sm:$0xff]
      %v306 = vld [vmem:[%s1 + $0xe8] sm:$0xff]
      %v307 = vld [vmem:[%s1 + $0xf0] sm:$0xff]
      %v308 = vld [vmem:[%s1 + $0xf8] sm:$0xff]
      %v309 = vld [vmem:[%s2] sm:$0xf]
      %v311 = vlaneseq
      %v312 = vshrl.u32 %v311, 7
      %v313 = vsub.s32 0, %v312
      %v314 = vrot.slane %v309, %v313
      %v315 = vlaneseq
      %v316 = vshrl.u32 %v315, 7
      %v317 = vsub.s32 1, %v316
      %v318 = vrot.slane %v309, %v317
      %v319 = vlaneseq
      %v320 = vshrl.u32 %v319, 7
      %v321 = vsub.s32 2, %v320
      %v322 = vrot.slane %v309, %v321
      %v323 = vlaneseq
      %v324 = vshrl.u32 %v323, 7
      %v325 = vsub.s32 3, %v324
      %v326 = vrot.slane %v309, %v325
      %v363 = vunpack.c.l.b16 %v277
      %v364 = vunpack.c.h.b16 %v277
      %v365 = vunpack.c.l.b16 %v278
      %v366 = vunpack.c.h.b16 %v278
      %v367 = vunpack.c.l.b16 %v279
      %v368 = vunpack.c.h.b16 %v279
      %v369 = vunpack.c.l.b16 %v280
      %v370 = vunpack.c.h.b16 %v280
      %v371 = vunpack.c.l.b16 %v281
      %v372 = vunpack.c.h.b16 %v281
      %v373 = vunpack.c.l.b16 %v282
      %v374 = vunpack.c.h.b16 %v282
      %v375 = vunpack.c.l.b16 %v283
      %v376 = vunpack.c.h.b16 %v283
      %v377 = vunpack.c.l.b16 %v284
      %v378 = vunpack.c.h.b16 %v284
      %v379 = vunpack.c.l.b16 %v285
      %v380 = vunpack.c.h.b16 %v285
      %v381 = vunpack.c.l.b16 %v286
      %v382 = vunpack.c.h.b16 %v286
      %v383 = vunpack.c.l.b16 %v287
      %v384 = vunpack.c.h.b16 %v287
      %v385 = vunpack.c.l.b16 %v288
      %v386 = vunpack.c.h.b16 %v288
      %v387 = vunpack.c.l.b16 %v289
      %v388 = vunpack.c.h.b16 %v289
      %v389 = vunpack.c.l.b16 %v290
      %v390 = vunpack.c.h.b16 %v290
      %v391 = vunpack.c.l.b16 %v291
      %v392 = vunpack.c.h.b16 %v291
      %v393 = vunpack.c.l.b16 %v292
      %v394 = vunpack.c.h.b16 %v292
      %v395 = vunpack.c.l.b16 %v293
      %v396 = vunpack.c.h.b16 %v293
      %v397 = vunpack.c.l.b16 %v294
      %v398 = vunpack.c.h.b16 %v294
      %v399 = vunpack.c.l.b16 %v295
      %v400 = vunpack.c.h.b16 %v295
      %v401 = vunpack.c.l.b16 %v296
      %v402 = vunpack.c.h.b16 %v296
      %v403 = vunpack.c.l.b16 %v297
      %v404 = vunpack.c.h.b16 %v297
      %v405 = vunpack.c.l.b16 %v298
      %v406 = vunpack.c.h.b16 %v298
      %v407 = vunpack.c.l.b16 %v299
      %v408 = vunpack.c.h.b16 %v299
      %v409 = vunpack.c.l.b16 %v300
      %v410 = vunpack.c.h.b16 %v300
      %v411 = vunpack.c.l.b16 %v301
      %v412 = vunpack.c.h.b16 %v301
      %v413 = vunpack.c.l.b16 %v302
      %v414 = vunpack.c.h.b16 %v302
      %v415 = vunpack.c.l.b16 %v303
      %v416 = vunpack.c.h.b16 %v303
      %v417 = vunpack.c.l.b16 %v304
      %v418 = vunpack.c.h.b16 %v304
      %v419 = vunpack.c.l.b16 %v305
      %v420 = vunpack.c.h.b16 %v305
      %v421 = vunpack.c.l.b16 %v306
      %v422 = vunpack.c.h.b16 %v306
      %v423 = vunpack.c.l.b16 %v307
      %v424 = vunpack.c.h.b16 %v307
      %v425 = vunpack.c.l.b16 %v308
      %v426 = vunpack.c.h.b16 %v308
      %v427 = vpack.c.b16 %v367, %v363
      %v428 = vpack.c.b16 %v368, %v364
      %v429 = vpack.c.b16 %v369, %v365
      %v430 = vpack.c.b16 %v370, %v366
      %v431 = vpack.c.b16 %v375, %v371
      %v432 = vpack.c.b16 %v376, %v372
      %v433 = vpack.c.b16 %v377, %v373
      %v434 = vpack.c.b16 %v378, %v374
      %v435 = vpack.c.b16 %v383, %v379
      %v436 = vpack.c.b16 %v384, %v380
      %v437 = vpack.c.b16 %v385, %v381
      %v438 = vpack.c.b16 %v386, %v382
      %v439 = vpack.c.b16 %v391, %v387
      %v440 = vpack.c.b16 %v392, %v388
      %v441 = vpack.c.b16 %v393, %v389
      %v442 = vpack.c.b16 %v394, %v390
      %v443 = vpack.c.b16 %v399, %v395
      %v444 = vpack.c.b16 %v400, %v396
      %v445 = vpack.c.b16 %v401, %v397
      %v446 = vpack.c.b16 %v402, %v398
      %v447 = vpack.c.b16 %v407, %v403
      %v448 = vpack.c.b16 %v408, %v404
      %v449 = vpack.c.b16 %v409, %v405
      %v450 = vpack.c.b16 %v410, %v406
      %v451 = vpack.c.b16 %v415, %v411
      %v452 = vpack.c.b16 %v416, %v412
      %v453 = vpack.c.b16 %v417, %v413
      %v454 = vpack.c.b16 %v418, %v414
      %v455 = vpack.c.b16 %v423, %v419
      %v456 = vpack.c.b16 %v424, %v420
      %v457 = vpack.c.b16 %v425, %v421
      %v458 = vpack.c.b16 %v426, %v422
      %491 = vmatprep.subr.bf16.mxu0 %v428
      %492 = vmatpush1.bf16.msra.mxu0 %v427
      %493 = vmatprep.subr.bf16.mxu0 %v432
      %494 = vmatpush1.bf16.msra.mxu0 %v431
      %495 = vmatprep.subr.bf16.mxu0 %v436
      %496 = vmatpush1.bf16.msra.mxu0 %v435
      %497 = vmatprep.subr.bf16.mxu0 %v440
      %498 = vmatpush1.bf16.msra.mxu0 %v439
      %499 = vmatprep.subr.bf16.mxu0 %v444
      %500 = vmatpush1.bf16.msra.mxu0 %v443
      %501 = vmatprep.subr.bf16.mxu0 %v448
      %502 = vmatpush1.bf16.msra.mxu0 %v447
      %503 = vmatprep.subr.bf16.mxu0 %v452
      %504 = vmatpush1.bf16.msra.mxu0 %v451
      %505 = vmatprep.subr.bf16.mxu0 %v456
      %506 = vmatpush1.bf16.msra.mxu0 %v455
      %507 = vmatprep.subr.bf16.mxu0 0
      %508 = vmatpush1.bf16.msra.mxu0 0
      %509 = vmatprep.subr.bf16.mxu0 0
      %510 = vmatpush1.bf16.msra.mxu0 0
      %511 = vmatprep.subr.bf16.mxu0 0
      %512 = vmatpush1.bf16.msra.mxu0 0
      %513 = vmatprep.subr.bf16.mxu0 0
      %514 = vmatpush1.bf16.msra.mxu0 0
      %515 = vmatprep.subr.bf16.mxu0 0
      %516 = vmatpush1.bf16.msra.mxu0 0
      %517 = vmatprep.subr.bf16.mxu0 0
      %518 = vmatpush1.bf16.msra.mxu0 0
      %519 = vmatprep.subr.bf16.mxu0 0
      %520 = vmatpush1.bf16.msra.mxu0 0
      %521 = vmatprep.subr.bf16.mxu0 0
      %522 = vmatpush1.bf16.msra.mxu0 0
      %523 = vmatprep.mubr.bf16.mxu0 0
      %524 = vmatmul.mubr.bf16.gmra.mrb[0].mxu0 %v276
      %v525 = vpop.f32.mrb[0].mxu0
      %v526 = vadd.f32 %v314, %v525
      %v527 = vpop.f32.mrb[0].mxu0
      %v528 = vadd.f32 %v318, %v527
      %v529 = vpop.f32.mrb[0].mxu0
      %v530 = vpop.f32.mrb[0].mxu0
      %531 = vdwg.mxu0
      %532 = vmatprep.subr.bf16.mxu0 %v430
      %533 = vmatpush1.bf16.msra.mxu0 %v429
      %534 = vmatprep.subr.bf16.mxu0 %v434
      %535 = vmatpush1.bf16.msra.mxu0 %v433
      %536 = vmatprep.subr.bf16.mxu0 %v438
      %537 = vmatpush1.bf16.msra.mxu0 %v437
      %538 = vmatprep.subr.bf16.mxu0 %v442
      %539 = vmatpush1.bf16.msra.mxu0 %v441
      %540 = vmatprep.subr.bf16.mxu0 %v446
      %541 = vmatpush1.bf16.msra.mxu0 %v445
      %542 = vmatprep.subr.bf16.mxu0 %v450
      %543 = vmatpush1.bf16.msra.mxu0 %v449
      %544 = vmatprep.subr.bf16.mxu0 %v454
      %545 = vmatpush1.bf16.msra.mxu0 %v453
      %546 = vmatprep.subr.bf16.mxu0 %v458
      %547 = vmatpush1.bf16.msra.mxu0 %v457
      %548 = vmatprep.subr.bf16.mxu0 0
      %549 = vmatpush1.bf16.msra.mxu0 0
      %550 = vmatprep.subr.bf16.mxu0 0
      %551 = vmatpush1.bf16.msra.mxu0 0
      %552 = vmatprep.subr.bf16.mxu0 0
      %553 = vmatpush1.bf16.msra.mxu0 0
      %554 = vmatprep.subr.bf16.mxu0 0
      %555 = vmatpush1.bf16.msra.mxu0 0
      %556 = vmatprep.subr.bf16.mxu0 0
      %557 = vmatpush1.bf16.msra.mxu0 0
      %558 = vmatprep.subr.bf16.mxu0 0
      %559 = vmatpush1.bf16.msra.mxu0 0
      %560 = vmatprep.subr.bf16.mxu0 0
      %561 = vmatpush1.bf16.msra.mxu0 0
      %562 = vmatprep.subr.bf16.mxu0 0
      %563 = vmatpush1.bf16.msra.mxu0 0
      %564 = vmatprep.mubr.bf16.mxu0 0
      %565 = vmatmul.mubr.bf16.gmra.mrb[0].mxu0 %v276
      %v566 = vpop.f32.mrb[0].mxu0
      %v567 = vadd.f32 %v322, %v566
      %v568 = vpop.f32.mrb[0].mxu0
      %v569 = vadd.f32 %v326, %v568
      %v570 = vpop.f32.mrb[0].mxu0
      %v571 = vpop.f32.mrb[0].mxu0
      %572 = vdwg.mxu0
      %v573 = vmul.f32 %v526, %v526
      %v574 = vmul.f32 %v528, %v528
      %v575 = vmul.f32 %v567, %v567
      %v576 = vmul.f32 %v569, %v569
      %v577 = vmul.f32 %v526, %v573
      %v578 = vmul.f32 %v528, %v574
      %v579 = vmul.f32 %v567, %v575
      %v580 = vmul.f32 %v569, %v576
      %v581 = vmul.f32 %v577, 0.044715
      %v582 = vmul.f32 %v578, 0.044715
      %v583 = vmul.f32 %v579, 0.044715
      %v584 = vmul.f32 %v580, 0.044715
      %v585 = vadd.f32 %v526, %v581
      %v586 = vadd.f32 %v528, %v582
      %v587 = vadd.f32 %v567, %v583
      %v588 = vadd.f32 %v569, %v584
      %v589 = vmul.f32 %v585, 0.7978846
      %v590 = vmul.f32 %v586, 0.7978846
      %v591 = vmul.f32 %v587, 0.7978846
      %v592 = vmul.f32 %v588, 0.7978846
      %v593 = vtanh.pop %v589
      %v594 = vtanh.pop %v590
      %v595 = vtanh.pop %v591
      %v596 = vtanh.pop %v592
      %v597 = vadd.f32 %v593, 1.0
      %v598 = vadd.f32 %v594, 1.0
      %v599 = vadd.f32 %v595, 1.0
      %v600 = vadd.f32 %v596, 1.0
      %v601 = vmul.f32 %v597, 0.5
      %v602 = vmul.f32 %v598, 0.5
      %v603 = vmul.f32 %v599, 0.5
      %v604 = vmul.f32 %v600, 0.5
      %v605 = vmul.f32 %v526, %v601
      %v606 = vmul.f32 %v528, %v602
      %v607 = vmul.f32 %v567, %v603
      %v608 = vmul.f32 %v569, %v604
      %v609 = vpack.c.bf16 %v605, %v605
      %v610 = vpack.c.bf16 %v606, %v606
      %v611 = vpack.c.bf16 %v607, %v607
      %v612 = vpack.c.bf16 %v608, %v608
      %v613 = vld [vmem:[%s3] sm:$0xf]
      %v614 = vld [vmem:[%s3 + $0x4] sm:$0xf]
      %v615 = vld [vmem:[%s3 + $0x8] sm:$0xf]
      %v616 = vld [vmem:[%s3 + $0xc] sm:$0xf]
      %v617 = vld [vmem:[%s3 + $0x10] sm:$0xf]
      %v618 = vld [vmem:[%s3 + $0x14] sm:$0xf]
      %v619 = vld [vmem:[%s3 + $0x18] sm:$0xf]
      %v620 = vld [vmem:[%s3 + $0x1c] sm:$0xf]
      %v621 = vld [vmem:[%s3 + $0x20] sm:$0xf]
      %v622 = vld [vmem:[%s3 + $0x24] sm:$0xf]
      %v623 = vld [vmem:[%s3 + $0x28] sm:$0xf]
      %v624 = vld [vmem:[%s3 + $0x2c] sm:$0xf]
      %v625 = vld [vmem:[%s3 + $0x30] sm:$0xf]
      %v626 = vld [vmem:[%s3 + $0x34] sm:$0xf]
      %v627 = vld [vmem:[%s3 + $0x38] sm:$0xf]
      %v628 = vld [vmem:[%s3 + $0x3c] sm:$0xf]
      %v629 = vld [vmem:[%s3 + $0x40] sm:$0xf]
      %v630 = vld [vmem:[%s3 + $0x44] sm:$0xf]
      %v631 = vld [vmem:[%s3 + $0x48] sm:$0xf]
      %v632 = vld [vmem:[%s3 + $0x4c] sm:$0xf]
      %v633 = vld [vmem:[%s3 + $0x50] sm:$0xf]
      %v634 = vld [vmem:[%s3 + $0x54] sm:$0xf]
      %v635 = vld [vmem:[%s3 + $0x58] sm:$0xf]
      %v636 = vld [vmem:[%s3 + $0x5c] sm:$0xf]
      %v637 = vld [vmem:[%s3 + $0x60] sm:$0xf]
      %v638 = vld [vmem:[%s3 + $0x64] sm:$0xf]
      %v639 = vld [vmem:[%s3 + $0x68] sm:$0xf]
      %v640 = vld [vmem:[%s3 + $0x6c] sm:$0xf]
      %v641 = vld [vmem:[%s3 + $0x70] sm:$0xf]
      %v642 = vld [vmem:[%s3 + $0x74] sm:$0xf]
      %v643 = vld [vmem:[%s3 + $0x78] sm:$0xf]
      %v644 = vld [vmem:[%s3 + $0x7c] sm:$0xf]
      %v645 = vld [vmem:[%s3 + $0x80] sm:$0xf]
      %v646 = vld [vmem:[%s3 + $0x84] sm:$0xf]
      %v647 = vld [vmem:[%s3 + $0x88] sm:$0xf]
      %v648 = vld [vmem:[%s3 + $0x8c] sm:$0xf]
      %v649 = vld [vmem:[%s3 + $0x90] sm:$0xf]
      %v650 = vld [vmem:[%s3 + $0x94] sm:$0xf]
      %v651 = vld [vmem:[%s3 + $0x98] sm:$0xf]
      %v652 = vld [vmem:[%s3 + $0x9c] sm:$0xf]
      %v653 = vld [vmem:[%s3 + $0xa0] sm:$0xf]
      %v654 = vld [vmem:[%s3 + $0xa4] sm:$0xf]
      %v655 = vld [vmem:[%s3 + $0xa8] sm:$0xf]
      %v656 = vld [vmem:[%s3 + $0xac] sm:$0xf]
      %v657 = vld [vmem:[%s3 + $0xb0] sm:$0xf]
      %v658 = vld [vmem:[%s3 + $0xb4] sm:$0xf]
      %v659 = vld [vmem:[%s3 + $0xb8] sm:$0xf]
      %v660 = vld [vmem:[%s3 + $0xbc] sm:$0xf]
      %v661 = vld [vmem:[%s3 + $0xc0] sm:$0xf]
      %v662 = vld [vmem:[%s3 + $0xc4] sm:$0xf]
      %v663 = vld [vmem:[%s3 + $0xc8] sm:$0xf]
      %v664 = vld [vmem:[%s3 + $0xcc] sm:$0xf]
      %v665 = vld [vmem:[%s3 + $0xd0] sm:$0xf]
      %v666 = vld [vmem:[%s3 + $0xd4] sm:$0xf]
      %v667 = vld [vmem:[%s3 + $0xd8] sm:$0xf]
      %v668 = vld [vmem:[%s3 + $0xdc] sm:$0xf]
      %v669 = vld [vmem:[%s3 + $0xe0] sm:$0xf]
      %v670 = vld [vmem:[%s3 + $0xe4] sm:$0xf]
      %v671 = vld [vmem:[%s3 + $0xe8] sm:$0xf]
      %v672 = vld [vmem:[%s3 + $0xec] sm:$0xf]
      %v673 = vld [vmem:[%s3 + $0xf0] sm:$0xf]
      %v674 = vld [vmem:[%s3 + $0xf4] sm:$0xf]
      %v675 = vld [vmem:[%s3 + $0xf8] sm:$0xf]
      %v676 = vld [vmem:[%s3 + $0xfc] sm:$0xf]
      %v677 = vld [vmem:[%s4] sm:$0x1]
      %v679 = vlaneseq
      %v680 = vshrl.u32 %v679, 7
      %v681 = vsub.s32 0, %v680
      %v682 = vrot.slane %v677, %v681
      %v748 = vunpack.c.l.b16 %v613
      %v749 = vunpack.c.l.b16 %v614
      %v750 = vunpack.c.l.b16 %v615
      %v751 = vunpack.c.l.b16 %v616
      %v752 = vunpack.c.l.b16 %v617
      %v753 = vunpack.c.l.b16 %v618
      %v754 = vunpack.c.l.b16 %v619
      %v755 = vunpack.c.l.b16 %v620
      %v756 = vunpack.c.l.b16 %v621
      %v757 = vunpack.c.l.b16 %v622
      %v758 = vunpack.c.l.b16 %v623
      %v759 = vunpack.c.l.b16 %v624
      %v760 = vunpack.c.l.b16 %v625
      %v761 = vunpack.c.l.b16 %v626
      %v762 = vunpack.c.l.b16 %v627
      %v763 = vunpack.c.l.b16 %v628
      %v764 = vunpack.c.l.b16 %v629
      %v765 = vunpack.c.l.b16 %v630
      %v766 = vunpack.c.l.b16 %v631
      %v767 = vunpack.c.l.b16 %v632
      %v768 = vunpack.c.l.b16 %v633
      %v769 = vunpack.c.l.b16 %v634
      %v770 = vunpack.c.l.b16 %v635
      %v771 = vunpack.c.l.b16 %v636
      %v772 = vunpack.c.l.b16 %v637
      %v773 = vunpack.c.l.b16 %v638
      %v774 = vunpack.c.l.b16 %v639
      %v775 = vunpack.c.l.b16 %v640
      %v776 = vunpack.c.l.b16 %v641
      %v777 = vunpack.c.l.b16 %v642
      %v778 = vunpack.c.l.b16 %v643
      %v779 = vunpack.c.l.b16 %v644
      %v780 = vunpack.c.l.b16 %v645
      %v781 = vunpack.c.l.b16 %v646
      %v782 = vunpack.c.l.b16 %v647
      %v783 = vunpack.c.l.b16 %v648
      %v784 = vunpack.c.l.b16 %v649
      %v785 = vunpack.c.l.b16 %v650
      %v786 = vunpack.c.l.b16 %v651
      %v787 = vunpack.c.l.b16 %v652
      %v788 = vunpack.c.l.b16 %v653
      %v789 = vunpack.c.l.b16 %v654
      %v790 = vunpack.c.l.b16 %v655
      %v791 = vunpack.c.l.b16 %v656
      %v792 = vunpack.c.l.b16 %v657
      %v793 = vunpack.c.l.b16 %v658
      %v794 = vunpack.c.l.b16 %v659
      %v795 = vunpack.c.l.b16 %v660
      %v796 = vunpack.c.l.b16 %v661
      %v797 = vunpack.c.l.b16 %v662
      %v798 = vunpack.c.l.b16 %v663
      %v799 = vunpack.c.l.b16 %v664
      %v800 = vunpack.c.l.b16 %v665
      %v801 = vunpack.c.l.b16 %v666
      %v802 = vunpack.c.l.b16 %v667
      %v803 = vunpack.c.l.b16 %v668
      %v804 = vunpack.c.l.b16 %v669
      %v805 = vunpack.c.l.b16 %v670
      %v806 = vunpack.c.l.b16 %v671
      %v807 = vunpack.c.l.b16 %v672
      %v808 = vunpack.c.l.b16 %v673
      %v809 = vunpack.c.l.b16 %v674
      %v810 = vunpack.c.l.b16 %v675
      %v811 = vunpack.c.l.b16 %v676
      %v812 = vpack.c.b16 %v749, %v748
      %v813 = vpack.c.b16 %v751, %v750
      %v814 = vpack.c.b16 %v753, %v752
      %v815 = vpack.c.b16 %v755, %v754
      %v816 = vpack.c.b16 %v757, %v756
      %v817 = vpack.c.b16 %v759, %v758
      %v818 = vpack.c.b16 %v761, %v760
      %v819 = vpack.c.b16 %v763, %v762
      %v820 = vpack.c.b16 %v765, %v764
      %v821 = vpack.c.b16 %v767, %v766
      %v822 = vpack.c.b16 %v769, %v768
      %v823 = vpack.c.b16 %v771, %v770
      %v824 = vpack.c.b16 %v773, %v772
      %v825 = vpack.c.b16 %v775, %v774
      %v826 = vpack.c.b16 %v777, %v776
      %v827 = vpack.c.b16 %v779, %v778
      %v828 = vpack.c.b16 %v781, %v780
      %v829 = vpack.c.b16 %v783, %v782
      %v830 = vpack.c.b16 %v785, %v784
      %v831 = vpack.c.b16 %v787, %v786
      %v832 = vpack.c.b16 %v789, %v788
      %v833 = vpack.c.b16 %v791, %v790
      %v834 = vpack.c.b16 %v793, %v792
      %v835 = vpack.c.b16 %v795, %v794
      %v836 = vpack.c.b16 %v797, %v796
      %v837 = vpack.c.b16 %v799, %v798
      %v838 = vpack.c.b16 %v801, %v800
      %v839 = vpack.c.b16 %v803, %v802
      %v840 = vpack.c.b16 %v805, %v804
      %v841 = vpack.c.b16 %v807, %v806
      %v842 = vpack.c.b16 %v809, %v808
      %v843 = vpack.c.b16 %v811, %v810
      %876 = vmatprep.subr.bf16.mxu0 0
      %877 = vmatpush1.bf16.msra.mxu0 %v812
      %878 = vmatprep.subr.bf16.mxu0 0
      %879 = vmatpush1.bf16.msra.mxu0 %v813
      %880 = vmatprep.subr.bf16.mxu0 0
      %881 = vmatpush1.bf16.msra.mxu0 %v814
      %882 = vmatprep.subr.bf16.mxu0 0
      %883 = vmatpush1.bf16.msra.mxu0 %v815
      %884 = vmatprep.subr.bf16.mxu0 0
      %885 = vmatpush1.bf16.msra.mxu0 %v816
      %886 = vmatprep.subr.bf16.mxu0 0
      %887 = vmatpush1.bf16.msra.mxu0 %v817
      %888 = vmatprep.subr.bf16.mxu0 0
      %889 = vmatpush1.bf16.msra.mxu0 %v818
      %890 = vmatprep.subr.bf16.mxu0 0
      %891 = vmatpush1.bf16.msra.mxu0 %v819
      %892 = vmatprep.subr.bf16.mxu0 0
      %893 = vmatpush1.bf16.msra.mxu0 %v820
      %894 = vmatprep.subr.bf16.mxu0 0
      %895 = vmatpush1.bf16.msra.mxu0 %v821
      %896 = vmatprep.subr.bf16.mxu0 0
      %897 = vmatpush1.bf16.msra.mxu0 %v822
      %898 = vmatprep.subr.bf16.mxu0 0
      %899 = vmatpush1.bf16.msra.mxu0 %v823
      %900 = vmatprep.subr.bf16.mxu0 0
      %901 = vmatpush1.bf16.msra.mxu0 %v824
      %902 = vmatprep.subr.bf16.mxu0 0
      %903 = vmatpush1.bf16.msra.mxu0 %v825
      %904 = vmatprep.subr.bf16.mxu0 0
      %905 = vmatpush1.bf16.msra.mxu0 %v826
      %906 = vmatprep.subr.bf16.mxu0 0
      %907 = vmatpush1.bf16.msra.mxu0 %v827
      %908 = vmatprep.mubr.bf16.mxu0 %v610
      %909 = vmatmul.mubr.bf16.gmra.mrb[0].mxu0 %v609
      %v910 = vpop.f32.mrb[0].mxu0
      %v911 = vadd.f32 %v682, %v910
      %v912 = vpop.f32.mrb[0].mxu0
      %v913 = vpop.f32.mrb[0].mxu0
      %v914 = vpop.f32.mrb[0].mxu0
      %915 = vdwg.mxu0
      %916 = vmatprep.subr.bf16.mxu0 0
      %917 = vmatpush1.bf16.msra.mxu0 %v828
      %918 = vmatprep.subr.bf16.mxu0 0
      %919 = vmatpush1.bf16.msra.mxu0 %v829
      %920 = vmatprep.subr.bf16.mxu0 0
      %921 = vmatpush1.bf16.msra.mxu0 %v830
      %922 = vmatprep.subr.bf16.mxu0 0
      %923 = vmatpush1.bf16.msra.mxu0 %v831
      %924 = vmatprep.subr.bf16.mxu0 0
      %925 = vmatpush1.bf16.msra.mxu0 %v832
      %926 = vmatprep.subr.bf16.mxu0 0
      %927 = vmatpush1.bf16.msra.mxu0 %v833
      %928 = vmatprep.subr.bf16.mxu0 0
      %929 = vmatpush1.bf16.msra.mxu0 %v834
      %930 = vmatprep.subr.bf16.mxu0 0
      %931 = vmatpush1.bf16.msra.mxu0 %v835
      %932 = vmatprep.subr.bf16.mxu0 0
      %933 = vmatpush1.bf16.msra.mxu0 %v836
      %934 = vmatprep.subr.bf16.mxu0 0
      %935 = vmatpush1.bf16.msra.mxu0 %v837
      %936 = vmatprep.subr.bf16.mxu0 0
      %937 = vmatpush1.bf16.msra.mxu0 %v838
      %938 = vmatprep.subr.bf16.mxu0 0
      %939 = vmatpush1.bf16.msra.mxu0 %v839
      %940 = vmatprep.subr.bf16.mxu0 0
      %941 = vmatpush1.bf16.msra.mxu0 %v840
      %942 = vmatprep.subr.bf16.mxu0 0
      %943 = vmatpush1.bf16.msra.mxu0 %v841
      %944 = vmatprep.subr.bf16.mxu0 0
      %945 = vmatpush1.bf16.msra.mxu0 %v842
      %946 = vmatprep.subr.bf16.mxu0 0
      %947 = vmatpush1.bf16.msra.mxu0 %v843
      %948 = vmatprep.mubr.bf16.mxu0 %v612
      %949 = vmatmul.mubr.bf16.gmra.mrb[0].mxu0 %v611
      %v950 = vpop.f32.mrb[0].mxu0
      %v951 = vadd.f32 %v911, %v950
      %v952 = vpop.f32.mrb[0].mxu0
      %v953 = vpop.f32.mrb[0].mxu0
      %v954 = vpop.f32.mrb[0].mxu0
      %955 = vdwg.mxu0
      %v956 = vadd.f32 %v951, %v275
      %v957 = vld [vmem:[%s5] sm:$0x1]
      %v958 = vld [vmem:[%s6] sm:$0x1]
      %959 = vadd.xlane.f32.xlu0 %v956
      %v960 = vpop.xlane.xlu0 %959
      %v961 = vrcp.pop 128.0
      %v962 = vmul.f32 %v960, %v961
      %v963 = vsub.f32 %v956, %v962
      %v964 = vmul.f32 %v963, %v963
      %965 = vadd.xlane.f32.xlu0 %v964
      %v966 = vpop.xlane.xlu0 %965
      %v967 = vmul.f32 %v966, %v961
      %v968 = vadd.f32 %v967, 1e-12
      %v969 = vrsqrt.pop %v968
      %v970 = vmul.f32 %v963, %v969
      %v972 = vlaneseq
      %v973 = vshrl.u32 %v972, 7
      %v974 = vsub.s32 0, %v973
      %v975 = vrot.slane %v957, %v974
      %v977 = vmul.f32 %v970, %v975
      %v979 = vlaneseq
      %v980 = vshrl.u32 %v979, 7
      %v981 = vsub.s32 0, %v980
      %v982 = vrot.slane %v958, %v981
      %v984 = vadd.f32 %v977, %v982
      %985 = vst [vmem:[%s273] sm:$0xff] %v984
      %p986 = scmp.lt.s32.totalorder %s18, 1
      %s987 = scalar_select %p986, %s18, 1
      %s988 = smul.addr %s987, 8
      %s989 = scalar_lea.vmem %s7, %s988
      // Predicated region
      $region49: #{bert_encoder.13} parent=47 // pred_check
        %p990 = pneg %p188
      $region50: #{bert_encoder.13} parent=47 // pred_check_branch
        %992 = sbr.rel (%p990) target = $region52
      $region51: #{bert_encoder.13} parent=47 // pred_region
        _
      $region52: #{bert_encoder.13} parent=47 // pred_fallthru
        _
    $region48: #{bert_encoder.13} parent=5 // pred_fallthru
      _
    %p993 = scmp.le.s32.totalorder 2, %s13
    // Predicated region
    $region53: #{bert_encoder.13} parent=5 // pred_check
      %p994 = pneg %p993
    $region54: #{bert_encoder.13} parent=5 // pred_check_branch
      %996 = sbr.rel (%p994) target = $region56
    $region55: #{bert_encoder.13} parent=5 // pred_region
      %s997 = ssub.s32 %s13, 2
      // Predicated region
      $region57: #{bert_encoder.13} parent=55 // pred_check
        %p998 = pneg %p194
      $region58: #{bert_encoder.13} parent=55 // pred_check_branch
        %1000 = sbr.rel (%p998) target = $region60
      $region59: #{bert_encoder.13} parent=55 // pred_region
        %p1001 = scmp.lt.s32.totalorder %s19, 1
        %s1002 = scalar_select %p1001, %s19, 1
        %s1003 = smul.addr %s1002, 8
        %s1004 = scalar_lea.vmem %s7, %s1003
      $region60: #{bert_encoder.13} parent=55 // pred_fallthru
        _
    $region56: #{bert_encoder.13} parent=5 // pred_fallthru
      _
  $region6: #{bert_encoder.13} parent=0 // loop_footer
    %s17 = sadd.s32 1, %s13
  $region7: #{bert_encoder.13} parent=0 // loop_footer_branch
    %12 = sbr.rel target = $region3
  $region8: #{bert_encoder.13} parent=0 // loop_exit
    _

</llo_original>
